<compile_context>
chip_gen: v7x
topology: tpu7x:2x2x1
jax: 0.10.0
libtpu: 0.0.40
codegen_flags: <defaults>
</compile_context>

<pallas_src>
import functools

import jax
import jax.numpy as jnp
from jax.experimental import pallas as pl
from jax.experimental.pallas import tpu as pltpu

EPS = 1e-05


def _bn_kernel(x_ref, gamma_ref, beta_ref, o_ref, mean_ref, var_ref, *, chunk_c):
    tile_c, L = x_ref.shape
    inv_l = 1.0 / float(L)
    n_chunks = tile_c // chunk_c

    def body(j, carry):
        r = pl.multiple_of(j * chunk_c, chunk_c)
        sl = pl.ds(r, chunk_c)

        xc = x_ref[sl, :]
        if xc.dtype != jnp.float32:  # stats in f32 (needed on v5e; free elsewhere)
            xc = xc.astype(jnp.float32)

        # Per-channel biased statistics over batch*spatial (PyTorch training-mode norm).
        mean = jnp.sum(xc, axis=-1, keepdims=True) * inv_l        # (chunk_c, 1)
        d = xc - mean
        var = jnp.sum(d * d, axis=-1, keepdims=True) * inv_l      # (chunk_c, 1)
        inv = jax.lax.rsqrt(var + EPS)                            # EUP rsqrt

        scale = inv * gamma_ref[sl, :]                            # (chunk_c, 1)
        o_ref[sl, :] = (d * scale + beta_ref[sl, :]).astype(o_ref.dtype)
        mean_ref[sl, :] = mean
        var_ref[sl, :] = var
        return carry

    jax.lax.fori_loop(0, n_chunks, body, 0, unroll=True)


def _pick_tile_c(C):
    # v5e/v6e: 1 TensorCore -> 2 grid steps.  v7x (2 TCs) / unknown -> 4 steps.
    try:
        kind = jax.devices()[0].device_kind.lower()
    except Exception:
        kind = ""
    n_steps = 2 if ("v5" in kind or "v6" in kind) else 4
    if C % n_steps == 0 and (C // n_steps) % 8 == 0:
        return C // n_steps
    return C


def _pick_chunk_c(tile_c):
    # <=192 channel rows per in-kernel pass (=> <=48 live f32 vregs), dividing tile_c.
    c = min(tile_c, 192)
    while tile_c % c != 0:
        c -= 8
    return max(c, 8)


def batchnorm2d_pallas(x_nchw, gamma, beta, *, tile_c=None):
    N, C, H, W = x_nchw.shape
    if N != 1:
        # TODO(synk): general N needs a batch-block reduction grid axis; the free
        # (C, L) reshape below relies on N == 1 (as in the source module).
        raise NotImplementedError("batchnorm2d_pallas currently assumes N == 1")
    L = N * H * W

    if tile_c is None:
        tile_c = _pick_tile_c(C)
    assert C % tile_c == 0, "channel count must be divisible by tile_c"
    assert tile_c % 8 == 0, "tile_c must be sublane-aligned"
    chunk_c = _pick_chunk_c(tile_c)

    # Free reshapes: contiguous NCHW with N=1 is exactly (C, H*W) in memory.
    x_cl = x_nchw.reshape(C, L)
    gamma2 = gamma.reshape(C, 1).astype(jnp.float32)
    beta2 = beta.reshape(C, 1).astype(jnp.float32)

    grid = (C // tile_c,)
    out_cl, mean_c, var_c = pl.pallas_call(
        functools.partial(_bn_kernel, chunk_c=chunk_c),
        out_shape=(
            jax.ShapeDtypeStruct((C, L), x_nchw.dtype),
            jax.ShapeDtypeStruct((C, 1), jnp.float32),
            jax.ShapeDtypeStruct((C, 1), jnp.float32),
        ),
        grid_spec=pltpu.PrefetchScalarGridSpec(
            num_scalar_prefetch=0,
            grid=grid,
            in_specs=[
                pl.BlockSpec((tile_c, L), lambda i: (i, 0)),
                pl.BlockSpec((tile_c, 1), lambda i: (i, 0)),
                pl.BlockSpec((tile_c, 1), lambda i: (i, 0)),
            ],
            out_specs=[
                pl.BlockSpec((tile_c, L), lambda i: (i, 0)),
                pl.BlockSpec((tile_c, 1), lambda i: (i, 0)),
                pl.BlockSpec((tile_c, 1), lambda i: (i, 0)),
            ],
        ),
        compiler_params=pltpu.CompilerParams(
            dimension_semantics=("parallel",),
        ),
        cost_estimate=pl.CostEstimate(
            flops=5 * L * C,
            transcendentals=C,
            bytes_accessed=(2 * L * C + 4 * C) * 4,
        ),
    )(x_cl, gamma2, beta2)

    out = out_cl.reshape(N, C, H, W)  # free reshape back to NCHW
    return out, mean_c.reshape(C), var_c.reshape(C)


def batchnorm2d_ref(x_nchw, gamma, beta):
    mean = jnp.mean(x_nchw, axis=(0, 2, 3), keepdims=True)
    var = jnp.mean((x_nchw - mean) ** 2, axis=(0, 2, 3), keepdims=True)
    g = gamma.reshape(1, -1, 1, 1)
    b = beta.reshape(1, -1, 1, 1)
    return (x_nchw - mean) * jax.lax.rsqrt(var + EPS) * g + b


if __name__ == "__main__":
    key = jax.random.PRNGKey(0)
    kx, kg, kb = jax.random.split(key, 3)

    N, C, H, W = 1, 2304, 7, 7  # matches x387 = torch.randn([1, 2304, 7, 7])
    x = jax.random.normal(kx, (N, C, H, W), dtype=jnp.float32)
    # PyTorch default init is weight=1, bias=0; use deterministic nontrivial
    # values so the affine path is actually exercised.
    gamma = 1.0 + 0.1 * jax.random.normal(kg, (C,), dtype=jnp.float32)
    beta = 0.1 * jax.random.normal(kb, (C,), dtype=jnp.float32)

    out, batch_mean, batch_var = batchnorm2d_pallas(x, gamma, beta)
    out = jax.block_until_ready(out)

    ref = batchnorm2d_ref(x, gamma, beta)
    assert out.shape == (N, C, H, W)
    assert jnp.max(jnp.abs(out - ref)) < 1e-4

    ref_mean = jnp.mean(x, axis=(0, 2, 3))
    ref_var = jnp.mean((x - ref_mean.reshape(1, C, 1, 1)) ** 2, axis=(0, 2, 3))
    assert jnp.max(jnp.abs(batch_mean - ref_mean)) < 1e-5
    assert jnp.max(jnp.abs(batch_var - ref_var)) < 1e-5

    # PyTorch-style running-buffer update (momentum=0.1, UNBIASED variance),
    # computed from the stats the kernel already produced (no extra reads of x).
    momentum = 0.1
    count = float(N * H * W)
    running_mean = jnp.zeros((C,), jnp.float32)
    running_var = jnp.ones((C,), jnp.float32)
    running_mean = (1.0 - momentum) * running_mean + momentum * batch_mean
    running_var = (1.0 - momentum) * running_var + momentum * batch_var * (count / (count - 1.0))
    jax.block_until_ready((running_mean, running_var))

    print("KERNEL_OK")
</pallas_src>

<mosaic_0001>
module attributes {stable_mosaic.version = 11 : i64} {
  func.func @_bn_kernel(%arg0: i32, %arg1: memref<576x49xf32, #tpu.memory_space<vmem>>, %arg2: memref<576x1xf32, #tpu.memory_space<vmem>>, %arg3: memref<576x1xf32, #tpu.memory_space<vmem>>, %arg4: memref<576x49xf32, #tpu.memory_space<vmem>>, %arg5: memref<576x1xf32, #tpu.memory_space<vmem>>, %arg6: memref<576x1xf32, #tpu.memory_space<vmem>>) attributes {dimension_semantics = [#tpu.dimension_semantics<parallel>], iteration_bounds = array<i64: 4>, scalar_prefetch = 0 : i64, scratch_operands = 0 : i64, tpu.core_type = #tpu.core_type<tc>, window_params = [{transform_indices = @transform_0, window_bounds = array<i64: 576, 49>}, {transform_indices = @transform_1, window_bounds = array<i64: 576, 1>}, {transform_indices = @transform_2, window_bounds = array<i64: 576, 1>}, {transform_indices = @transform_3, window_bounds = array<i64: 576, 49>}, {transform_indices = @transform_4, window_bounds = array<i64: 576, 1>}, {transform_indices = @transform_5, window_bounds = array<i64: 576, 1>}]} {
    %c0_i32 = arith.constant 0 : i32
    %c192_i32 = arith.constant 192 : i32
    %0 = arith.muli %c0_i32, %c192_i32 : i32
    %1 = tpu.assume_multiple %0, 192 : i32
    %2 = arith.index_cast %1 : i32 to index
    %c0 = arith.constant 0 : index
    %3 = vector.load %arg1[%2, %c0] : memref<576x49xf32, #tpu.memory_space<vmem>>, vector<192x49xf32>
    %cst = arith.constant dense<0.000000e+00> : vector<192xf32>
    %4 = vector.multi_reduction <add>, %3, %cst [1] : vector<192x49xf32> to vector<192xf32>
    %5 = vector.shape_cast %4 : vector<192xf32> to vector<192x1xf32>
    %cst_0 = arith.constant 0.0204081628 : f32
    %6 = vector.broadcast %cst_0 : f32 to vector<192x1xf32>
    %7 = arith.mulf %5, %6 : vector<192x1xf32>
    %8 = vector.broadcast %7 : vector<192x1xf32> to vector<192x49xf32>
    %9 = arith.subf %3, %8 : vector<192x49xf32>
    %10 = arith.mulf %9, %9 : vector<192x49xf32>
    %cst_1 = arith.constant dense<0.000000e+00> : vector<192xf32>
    %11 = vector.multi_reduction <add>, %10, %cst_1 [1] : vector<192x49xf32> to vector<192xf32>
    %12 = vector.shape_cast %11 : vector<192xf32> to vector<192x1xf32>
    %cst_2 = arith.constant 0.0204081628 : f32
    %13 = vector.broadcast %cst_2 : f32 to vector<192x1xf32>
    %14 = arith.mulf %12, %13 : vector<192x1xf32>
    %cst_3 = arith.constant 9.99999974E-6 : f32
    %15 = vector.broadcast %cst_3 : f32 to vector<192x1xf32>
    %16 = arith.addf %14, %15 : vector<192x1xf32>
    %17 = math.rsqrt %16 : vector<192x1xf32>
    %18 = arith.index_cast %1 : i32 to index
    %c0_4 = arith.constant 0 : index
    %19 = vector.load %arg2[%18, %c0_4] : memref<576x1xf32, #tpu.memory_space<vmem>>, vector<192x1xf32>
    %20 = arith.mulf %17, %19 : vector<192x1xf32>
    %21 = vector.broadcast %20 : vector<192x1xf32> to vector<192x49xf32>
    %22 = arith.mulf %9, %21 : vector<192x49xf32>
    %23 = arith.index_cast %1 : i32 to index
    %c0_5 = arith.constant 0 : index
    %24 = vector.load %arg3[%23, %c0_5] : memref<576x1xf32, #tpu.memory_space<vmem>>, vector<192x1xf32>
    %25 = vector.broadcast %24 : vector<192x1xf32> to vector<192x49xf32>
    %26 = arith.addf %22, %25 : vector<192x49xf32>
    %27 = arith.index_cast %1 : i32 to index
    %c0_6 = arith.constant 0 : index
    %28 = vector.load %arg4[%27, %c0_6] : memref<576x49xf32, #tpu.memory_space<vmem>>, vector<192x49xf32>
    tpu.vector_store %arg4[%27, %c0_6], %26 {strides = array<i32>} : memref<576x49xf32, #tpu.memory_space<vmem>>, vector<192x49xf32>,
    %29 = arith.index_cast %1 : i32 to index
    %c0_7 = arith.constant 0 : index
    %30 = vector.load %arg5[%29, %c0_7] : memref<576x1xf32, #tpu.memory_space<vmem>>, vector<192x1xf32>
    tpu.vector_store %arg5[%29, %c0_7], %7 {strides = array<i32>} : memref<576x1xf32, #tpu.memory_space<vmem>>, vector<192x1xf32>,
    %31 = arith.index_cast %1 : i32 to index
    %c0_8 = arith.constant 0 : index
    %32 = vector.load %arg6[%31, %c0_8] : memref<576x1xf32, #tpu.memory_space<vmem>>, vector<192x1xf32>
    tpu.vector_store %arg6[%31, %c0_8], %14 {strides = array<i32>} : memref<576x1xf32, #tpu.memory_space<vmem>>, vector<192x1xf32>,
    %c1_i32 = arith.constant 1 : i32
    %c192_i32_9 = arith.constant 192 : i32
    %33 = arith.muli %c1_i32, %c192_i32_9 : i32
    %34 = tpu.assume_multiple %33, 192 : i32
    %35 = arith.index_cast %34 : i32 to index
    %c0_10 = arith.constant 0 : index
    %36 = vector.load %arg1[%35, %c0_10] : memref<576x49xf32, #tpu.memory_space<vmem>>, vector<192x49xf32>
    %cst_11 = arith.constant dense<0.000000e+00> : vector<192xf32>
    %37 = vector.multi_reduction <add>, %36, %cst_11 [1] : vector<192x49xf32> to vector<192xf32>
    %38 = vector.shape_cast %37 : vector<192xf32> to vector<192x1xf32>
    %cst_12 = arith.constant 0.0204081628 : f32
    %39 = vector.broadcast %cst_12 : f32 to vector<192x1xf32>
    %40 = arith.mulf %38, %39 : vector<192x1xf32>
    %41 = vector.broadcast %40 : vector<192x1xf32> to vector<192x49xf32>
    %42 = arith.subf %36, %41 : vector<192x49xf32>
    %43 = arith.mulf %42, %42 : vector<192x49xf32>
    %cst_13 = arith.constant dense<0.000000e+00> : vector<192xf32>
    %44 = vector.multi_reduction <add>, %43, %cst_13 [1] : vector<192x49xf32> to vector<192xf32>
    %45 = vector.shape_cast %44 : vector<192xf32> to vector<192x1xf32>
    %cst_14 = arith.constant 0.0204081628 : f32
    %46 = vector.broadcast %cst_14 : f32 to vector<192x1xf32>
    %47 = arith.mulf %45, %46 : vector<192x1xf32>
    %cst_15 = arith.constant 9.99999974E-6 : f32
    %48 = vector.broadcast %cst_15 : f32 to vector<192x1xf32>
    %49 = arith.addf %47, %48 : vector<192x1xf32>
    %50 = math.rsqrt %49 : vector<192x1xf32>
    %51 = arith.index_cast %34 : i32 to index
    %c0_16 = arith.constant 0 : index
    %52 = vector.load %arg2[%51, %c0_16] : memref<576x1xf32, #tpu.memory_space<vmem>>, vector<192x1xf32>
    %53 = arith.mulf %50, %52 : vector<192x1xf32>
    %54 = vector.broadcast %53 : vector<192x1xf32> to vector<192x49xf32>
    %55 = arith.mulf %42, %54 : vector<192x49xf32>
    %56 = arith.index_cast %34 : i32 to index
    %c0_17 = arith.constant 0 : index
    %57 = vector.load %arg3[%56, %c0_17] : memref<576x1xf32, #tpu.memory_space<vmem>>, vector<192x1xf32>
    %58 = vector.broadcast %57 : vector<192x1xf32> to vector<192x49xf32>
    %59 = arith.addf %55, %58 : vector<192x49xf32>
    %60 = arith.index_cast %34 : i32 to index
    %c0_18 = arith.constant 0 : index
    %61 = vector.load %arg4[%60, %c0_18] : memref<576x49xf32, #tpu.memory_space<vmem>>, vector<192x49xf32>
    tpu.vector_store %arg4[%60, %c0_18], %59 {strides = array<i32>} : memref<576x49xf32, #tpu.memory_space<vmem>>, vector<192x49xf32>,
    %62 = arith.index_cast %34 : i32 to index
    %c0_19 = arith.constant 0 : index
    %63 = vector.load %arg5[%62, %c0_19] : memref<576x1xf32, #tpu.memory_space<vmem>>, vector<192x1xf32>
    tpu.vector_store %arg5[%62, %c0_19], %40 {strides = array<i32>} : memref<576x1xf32, #tpu.memory_space<vmem>>, vector<192x1xf32>,
    %64 = arith.index_cast %34 : i32 to index
    %c0_20 = arith.constant 0 : index
    %65 = vector.load %arg6[%64, %c0_20] : memref<576x1xf32, #tpu.memory_space<vmem>>, vector<192x1xf32>
    tpu.vector_store %arg6[%64, %c0_20], %47 {strides = array<i32>} : memref<576x1xf32, #tpu.memory_space<vmem>>, vector<192x1xf32>,
    %c2_i32 = arith.constant 2 : i32
    %c192_i32_21 = arith.constant 192 : i32
    %66 = arith.muli %c2_i32, %c192_i32_21 : i32
    %67 = tpu.assume_multiple %66, 192 : i32
    %68 = arith.index_cast %67 : i32 to index
    %c0_22 = arith.constant 0 : index
    %69 = vector.load %arg1[%68, %c0_22] : memref<576x49xf32, #tpu.memory_space<vmem>>, vector<192x49xf32>
    %cst_23 = arith.constant dense<0.000000e+00> : vector<192xf32>
    %70 = vector.multi_reduction <add>, %69, %cst_23 [1] : vector<192x49xf32> to vector<192xf32>
    %71 = vector.shape_cast %70 : vector<192xf32> to vector<192x1xf32>
    %cst_24 = arith.constant 0.0204081628 : f32
    %72 = vector.broadcast %cst_24 : f32 to vector<192x1xf32>
    %73 = arith.mulf %71, %72 : vector<192x1xf32>
    %74 = vector.broadcast %73 : vector<192x1xf32> to vector<192x49xf32>
    %75 = arith.subf %69, %74 : vector<192x49xf32>
    %76 = arith.mulf %75, %75 : vector<192x49xf32>
    %cst_25 = arith.constant dense<0.000000e+00> : vector<192xf32>
    %77 = vector.multi_reduction <add>, %76, %cst_25 [1] : vector<192x49xf32> to vector<192xf32>
    %78 = vector.shape_cast %77 : vector<192xf32> to vector<192x1xf32>
    %cst_26 = arith.constant 0.0204081628 : f32
    %79 = vector.broadcast %cst_26 : f32 to vector<192x1xf32>
    %80 = arith.mulf %78, %79 : vector<192x1xf32>
    %cst_27 = arith.constant 9.99999974E-6 : f32
    %81 = vector.broadcast %cst_27 : f32 to vector<192x1xf32>
    %82 = arith.addf %80, %81 : vector<192x1xf32>
    %83 = math.rsqrt %82 : vector<192x1xf32>
    %84 = arith.index_cast %67 : i32 to index
    %c0_28 = arith.constant 0 : index
    %85 = vector.load %arg2[%84, %c0_28] : memref<576x1xf32, #tpu.memory_space<vmem>>, vector<192x1xf32>
    %86 = arith.mulf %83, %85 : vector<192x1xf32>
    %87 = vector.broadcast %86 : vector<192x1xf32> to vector<192x49xf32>
    %88 = arith.mulf %75, %87 : vector<192x49xf32>
    %89 = arith.index_cast %67 : i32 to index
    %c0_29 = arith.constant 0 : index
    %90 = vector.load %arg3[%89, %c0_29] : memref<576x1xf32, #tpu.memory_space<vmem>>, vector<192x1xf32>
    %91 = vector.broadcast %90 : vector<192x1xf32> to vector<192x49xf32>
    %92 = arith.addf %88, %91 : vector<192x49xf32>
    %93 = arith.index_cast %67 : i32 to index
    %c0_30 = arith.constant 0 : index
    %94 = vector.load %arg4[%93, %c0_30] : memref<576x49xf32, #tpu.memory_space<vmem>>, vector<192x49xf32>
    tpu.vector_store %arg4[%93, %c0_30], %92 {strides = array<i32>} : memref<576x49xf32, #tpu.memory_space<vmem>>, vector<192x49xf32>,
    %95 = arith.index_cast %67 : i32 to index
    %c0_31 = arith.constant 0 : index
    %96 = vector.load %arg5[%95, %c0_31] : memref<576x1xf32, #tpu.memory_space<vmem>>, vector<192x1xf32>
    tpu.vector_store %arg5[%95, %c0_31], %73 {strides = array<i32>} : memref<576x1xf32, #tpu.memory_space<vmem>>, vector<192x1xf32>,
    %97 = arith.index_cast %67 : i32 to index
    %c0_32 = arith.constant 0 : index
    %98 = vector.load %arg6[%97, %c0_32] : memref<576x1xf32, #tpu.memory_space<vmem>>, vector<192x1xf32>
    tpu.vector_store %arg6[%97, %c0_32], %80 {strides = array<i32>} : memref<576x1xf32, #tpu.memory_space<vmem>>, vector<192x1xf32>,
    %c3_i32 = arith.constant 3 : i32
    return
  }
  func.func @transform_0(%arg0: i32) -> (i32, i32) {
    %c0_i32 = arith.constant 0 : i32
    %c0_i32_0 = arith.constant 0 : i32
    return %arg0, %c0_i32 : i32, i32
  }
  func.func @transform_1(%arg0: i32) -> (i32, i32) {
    %c0_i32 = arith.constant 0 : i32
    %c0_i32_0 = arith.constant 0 : i32
    return %arg0, %c0_i32 : i32, i32
  }
  func.func @transform_2(%arg0: i32) -> (i32, i32) {
    %c0_i32 = arith.constant 0 : i32
    %c0_i32_0 = arith.constant 0 : i32
    return %arg0, %c0_i32 : i32, i32
  }
  func.func @transform_3(%arg0: i32) -> (i32, i32) {
    %c0_i32 = arith.constant 0 : i32
    %c0_i32_0 = arith.constant 0 : i32
    return %arg0, %c0_i32 : i32, i32
  }
  func.func @transform_4(%arg0: i32) -> (i32, i32) {
    %c0_i32 = arith.constant 0 : i32
    %c0_i32_0 = arith.constant 0 : i32
    return %arg0, %c0_i32 : i32, i32
  }
  func.func @transform_5(%arg0: i32) -> (i32, i32) {
    %c0_i32 = arith.constant 0 : i32
    %c0_i32_0 = arith.constant 0 : i32
    return %arg0, %c0_i32 : i32, i32
  }
}

</mosaic_0001>

<llo_original>
// kernel: tpu_custom_call.1
$region0: #{tpu_custom_call.1}
  #allocation0 [shape = 'u32[]', space=smem, size = 0x4, offset = 0x4, fixed_abs, tag = 'smem constant byte address 0x4 - core index']
  #allocation1 [shape = 'u32[144,128]{1,0:T(1,128)}', space=vmem, size = 0x12000, scoped, tag = 'internal scratch']
  %s0 = inlined_call_operand.vmem [shape: f32[2304,49], index: 0, kind: input, shape index: {}]
  %s1 = inlined_call_operand.vmem [shape: f32[2304,1], index: 1, kind: input, shape index: {}]
  %s2 = inlined_call_operand.vmem [shape: f32[2304,1], index: 2, kind: input, shape index: {}]
  %s3 = inlined_call_operand.vmem [shape: f32[2304,49], index: 3, kind: output, shape index: {0}]
  %s4 = inlined_call_operand.vmem [shape: f32[2304,1], index: 4, kind: output, shape index: {1}]
  %s5 = inlined_call_operand.vmem [shape: f32[2304,1], index: 5, kind: output, shape index: {2}]
  %6 = xla_tuple %s3, %s4, %s5
  %s7 = sld [smem:[#allocation0]]
  $region61: #{tpu_custom_call.1} parent=0
    _
  %s9 = ssub.s32 1, %s7
  %s10 = scalar_select 0, %s9, %s7
  loop: start=0, step=1, limit=6
  $region2: #{tpu_custom_call.1} parent=0 // loop_pre_header
    _
  $region3: #{tpu_custom_call.1} parent=0 // loop_header
    %s12 = sphi 0, %s16
    %p13 = scmp.ge.s32.totalorder %s12, 6
    %s22 = sphi 0, %s24
    %s25 = sphi 0, %s22
    %s26 = sphi 0, %s25
    %s42 = sphi 0, %s26
    %s48 = sphi 0, %s50
    %s51 = sphi 0, %s48
    %s52 = sphi 0, %s51
    %s68 = sphi 0, %s52
    %s74 = sphi 0, %s76
    %s77 = sphi 0, %s74
    %s78 = sphi 0, %s77
    %s94 = sphi 0, %s78
    %s100 = sphi 0, %s102
    %s103 = sphi 0, %s100
    %s104 = sphi 0, %s103
    %s120 = sphi 0, %s104
    %s126 = sphi 0, %s128
    %s129 = sphi 0, %s126
    %s130 = sphi 0, %s129
    %s146 = sphi 0, %s130
    %s152 = sphi 0, %s154
    %s155 = sphi 0, %s152
    %s156 = sphi 0, %s155
    %s172 = sphi 0, %s156
  $region4: #{tpu_custom_call.1} parent=0 // loop_header_branch
    %15 = sbr.rel (%p13) target = $region8
  $region5: #{tpu_custom_call.1} parent=0 // loop_body
    %s17 = ssub.s32 %s12, 1
    %s18 = ssub.s32 %s12, 2
    %s19 = sadd.s32 %s12, 1
    %s20 = ssub.s32 %s12, %s19
    %p21 = scmp.eq.s32.totalorder %s20, 0
    %s23 = sadd.s32 %s22, 1
    %s24 = scalar_select %p21, %s22, %s23
    %p27 = pneg %p21
    %p28 = scmp.eq.s32.totalorder %s12, 3
    %p29 = por %p27, %p28
    %p30 = scmp.ne.s32.totalorder %s22, %s25
    %p31 = scmp.eq.s32.totalorder %s12, 0
    %p32 = por %p30, %p31
    %p33 = scmp.ne.s32.totalorder %s22, %s25
    %p34 = scmp.eq.s32.totalorder %s17, 3
    %p35 = por %p33, %p34
    %p36 = scmp.ne.s32.totalorder %s25, %s26
    %p37 = scmp.eq.s32.totalorder %s17, 0
    %p38 = por %p36, %p37
    %p39 = scmp.ne.s32.totalorder %s25, %s26
    %p40 = scmp.eq.s32.totalorder %s18, 3
    %p41 = por %p39, %p40
    %p43 = scmp.ne.s32.totalorder %s26, %s42
    %p44 = scmp.eq.s32.totalorder %s18, 0
    %p45 = por %p43, %p44
    %s46 = ssub.s32 %s12, %s19
    %p47 = scmp.eq.s32.totalorder %s46, 0
    %s49 = sadd.s32 %s48, 1
    %s50 = scalar_select %p47, %s48, %s49
    %p53 = pneg %p47
    %p54 = scmp.eq.s32.totalorder %s12, 3
    %p55 = por %p53, %p54
    %p56 = scmp.ne.s32.totalorder %s48, %s51
    %p57 = scmp.eq.s32.totalorder %s12, 0
    %p58 = por %p56, %p57
    %p59 = scmp.ne.s32.totalorder %s48, %s51
    %p60 = scmp.eq.s32.totalorder %s17, 3
    %p61 = por %p59, %p60
    %p62 = scmp.ne.s32.totalorder %s51, %s52
    %p63 = scmp.eq.s32.totalorder %s17, 0
    %p64 = por %p62, %p63
    %p65 = scmp.ne.s32.totalorder %s51, %s52
    %p66 = scmp.eq.s32.totalorder %s18, 3
    %p67 = por %p65, %p66
    %p69 = scmp.ne.s32.totalorder %s52, %s68
    %p70 = scmp.eq.s32.totalorder %s18, 0
    %p71 = por %p69, %p70
    %s72 = ssub.s32 %s12, %s19
    %p73 = scmp.eq.s32.totalorder %s72, 0
    %s75 = sadd.s32 %s74, 1
    %s76 = scalar_select %p73, %s74, %s75
    %p79 = pneg %p73
    %p80 = scmp.eq.s32.totalorder %s12, 3
    %p81 = por %p79, %p80
    %p82 = scmp.ne.s32.totalorder %s74, %s77
    %p83 = scmp.eq.s32.totalorder %s12, 0
    %p84 = por %p82, %p83
    %p85 = scmp.ne.s32.totalorder %s74, %s77
    %p86 = scmp.eq.s32.totalorder %s17, 3
    %p87 = por %p85, %p86
    %p88 = scmp.ne.s32.totalorder %s77, %s78
    %p89 = scmp.eq.s32.totalorder %s17, 0
    %p90 = por %p88, %p89
    %p91 = scmp.ne.s32.totalorder %s77, %s78
    %p92 = scmp.eq.s32.totalorder %s18, 3
    %p93 = por %p91, %p92
    %p95 = scmp.ne.s32.totalorder %s78, %s94
    %p96 = scmp.eq.s32.totalorder %s18, 0
    %p97 = por %p95, %p96
    %s98 = ssub.s32 %s12, %s19
    %p99 = scmp.eq.s32.totalorder %s98, 0
    %s101 = sadd.s32 %s100, 1
    %s102 = scalar_select %p99, %s100, %s101
    %p105 = pneg %p99
    %p106 = scmp.eq.s32.totalorder %s12, 3
    %p107 = por %p105, %p106
    %p108 = scmp.ne.s32.totalorder %s100, %s103
    %p109 = scmp.eq.s32.totalorder %s12, 0
    %p110 = por %p108, %p109
    %p111 = scmp.ne.s32.totalorder %s100, %s103
    %p112 = scmp.eq.s32.totalorder %s17, 3
    %p113 = por %p111, %p112
    %p114 = scmp.ne.s32.totalorder %s103, %s104
    %p115 = scmp.eq.s32.totalorder %s17, 0
    %p116 = por %p114, %p115
    %p117 = scmp.ne.s32.totalorder %s103, %s104
    %p118 = scmp.eq.s32.totalorder %s18, 3
    %p119 = por %p117, %p118
    %p121 = scmp.ne.s32.totalorder %s104, %s120
    %p122 = scmp.eq.s32.totalorder %s18, 0
    %p123 = por %p121, %p122
    %s124 = ssub.s32 %s12, %s19
    %p125 = scmp.eq.s32.totalorder %s124, 0
    %s127 = sadd.s32 %s126, 1
    %s128 = scalar_select %p125, %s126, %s127
    %p131 = pneg %p125
    %p132 = scmp.eq.s32.totalorder %s12, 3
    %p133 = por %p131, %p132
    %p134 = scmp.ne.s32.totalorder %s126, %s129
    %p135 = scmp.eq.s32.totalorder %s12, 0
    %p136 = por %p134, %p135
    %p137 = scmp.ne.s32.totalorder %s126, %s129
    %p138 = scmp.eq.s32.totalorder %s17, 3
    %p139 = por %p137, %p138
    %p140 = scmp.ne.s32.totalorder %s129, %s130
    %p141 = scmp.eq.s32.totalorder %s17, 0
    %p142 = por %p140, %p141
    %p143 = scmp.ne.s32.totalorder %s129, %s130
    %p144 = scmp.eq.s32.totalorder %s18, 3
    %p145 = por %p143, %p144
    %p147 = scmp.ne.s32.totalorder %s130, %s146
    %p148 = scmp.eq.s32.totalorder %s18, 0
    %p149 = por %p147, %p148
    %s150 = ssub.s32 %s12, %s19
    %p151 = scmp.eq.s32.totalorder %s150, 0
    %s153 = sadd.s32 %s152, 1
    %s154 = scalar_select %p151, %s152, %s153
    %p157 = pneg %p151
    %p158 = scmp.eq.s32.totalorder %s12, 3
    %p159 = por %p157, %p158
    %p160 = scmp.ne.s32.totalorder %s152, %s155
    %p161 = scmp.eq.s32.totalorder %s12, 0
    %p162 = por %p160, %p161
    %p163 = scmp.ne.s32.totalorder %s152, %s155
    %p164 = scmp.eq.s32.totalorder %s17, 3
    %p165 = por %p163, %p164
    %p166 = scmp.ne.s32.totalorder %s155, %s156
    %p167 = scmp.eq.s32.totalorder %s17, 0
    %p168 = por %p166, %p167
    %p169 = scmp.ne.s32.totalorder %s155, %s156
    %p170 = scmp.eq.s32.totalorder %s18, 3
    %p171 = por %p169, %p170
    %p173 = scmp.ne.s32.totalorder %s156, %s172
    %p174 = scmp.eq.s32.totalorder %s18, 0
    %p175 = por %p173, %p174
    %p176 = scmp.le.s32.totalorder 1, %s12
    %p177 = scmp.lt.s32.totalorder %s12, 5
    %p178 = pnand %p176, %p177
    %p179 = pneg %p178
    // Predicated region
    $region9: #{tpu_custom_call.1} parent=5 // pred_check
      _
    $region10: #{tpu_custom_call.1} parent=5 // pred_check_branch
      %181 = sbr.rel (%p178) target = $region12
    $region11: #{tpu_custom_call.1} parent=5 // pred_region
      %s182 = ssub.s32 %s12, 1
    $region12: #{tpu_custom_call.1} parent=5 // pred_fallthru
      _
    %p183 = scmp.lt.s32.totalorder %s12, 4
    // Predicated region
    $region13: #{tpu_custom_call.1} parent=5 // pred_check
      %p184 = pneg %p183
    $region14: #{tpu_custom_call.1} parent=5 // pred_check_branch
      %186 = sbr.rel (%p184) target = $region16
    $region15: #{tpu_custom_call.1} parent=5 // pred_region
      // Predicated region
      $region17: #{tpu_custom_call.1} parent=15 // pred_check
        %p187 = pneg %p32
      $region18: #{tpu_custom_call.1} parent=15 // pred_check_branch
        %189 = sbr.rel (%p187) target = $region20
      $region19: #{tpu_custom_call.1} parent=15 // pred_region
        %s190 = smul.u32 72, %s12
        %p191 = scmp.lt.s32.totalorder %s190, 287
        %s192 = scalar_select %p191, %s190, 287
        %s193 = smul.addr %s192, 8
        %s194 = scalar_lea.vmem %s0, %s193
        %s195 = smul.u32 72, %s12
      $region20: #{tpu_custom_call.1} parent=15 // pred_fallthru
        _
      // Predicated region
      $region21: #{tpu_custom_call.1} parent=15 // pred_check
        %p196 = pneg %p58
      $region22: #{tpu_custom_call.1} parent=15 // pred_check_branch
        %198 = sbr.rel (%p196) target = $region24
      $region23: #{tpu_custom_call.1} parent=15 // pred_region
        %s199 = smul.u32 72, %s12
        %p200 = scmp.lt.s32.totalorder %s199, 287
        %s201 = scalar_select %p200, %s199, 287
        %s202 = smul.addr %s201, 8
        %s203 = scalar_lea.vmem %s1, %s202
        %s204 = smul.u32 72, %s12
      $region24: #{tpu_custom_call.1} parent=15 // pred_fallthru
        _
      // Predicated region
      $region25: #{tpu_custom_call.1} parent=15 // pred_check
        %p205 = pneg %p84
      $region26: #{tpu_custom_call.1} parent=15 // pred_check_branch
        %207 = sbr.rel (%p205) target = $region28
      $region27: #{tpu_custom_call.1} parent=15 // pred_region
        %s208 = smul.u32 72, %s12
        %p209 = scmp.lt.s32.totalorder %s208, 287
        %s210 = scalar_select %p209, %s208, 287
        %s211 = smul.addr %s210, 8
        %s212 = scalar_lea.vmem %s2, %s211
        %s213 = smul.u32 72, %s12
      $region28: #{tpu_custom_call.1} parent=15 // pred_fallthru
        _
    $region16: #{tpu_custom_call.1} parent=5 // pred_fallthru
      _
    %p214 = scmp.le.s32.totalorder 1, %s12
    %p215 = scmp.lt.s32.totalorder %s12, 5
    %p216 = pnand %p214, %p215
    %p217 = pneg %p216
    // Predicated region
    $region29: #{tpu_custom_call.1} parent=5 // pred_check
      _
    $region30: #{tpu_custom_call.1} parent=5 // pred_check_branch
      %219 = sbr.rel (%p216) target = $region32
    $region31: #{tpu_custom_call.1} parent=5 // pred_region
      %s220 = ssub.s32 %s12, 1
      %s221 = smul.u32 72, %s17
      %p222 = scmp.lt.s32.totalorder %s221, 287
      %s223 = scalar_select %p222, %s221, 287
      %s224 = smul.addr %s223, 8
      %s225 = scalar_lea.vmem %s0, %s224
      %p226 = pneg %p38
      %p227 = pneg %p35
      %s228 = smul.u32 72, %s17
      %p229 = scmp.lt.s32.totalorder %s228, 287
      %s230 = scalar_select %p229, %s228, 287
      %s231 = smul.addr %s230, 8
      %s232 = scalar_lea.vmem %s1, %s231
      %p233 = pneg %p64
      %p234 = pneg %p61
      %s235 = smul.u32 72, %s17
      %p236 = scmp.lt.s32.totalorder %s235, 287
      %s237 = scalar_select %p236, %s235, 287
      %s238 = smul.addr %s237, 8
      %s239 = scalar_lea.vmem %s2, %s238
      %p240 = pneg %p90
      %p241 = pneg %p87
      %p242 = pneg %p116
      %p243 = pneg %p113
      %s244 = smul.u32 72, %s17
      %p245 = scmp.lt.s32.totalorder %s244, 287
      %s246 = scalar_select %p245, %s244, 287
      %s247 = smul.addr %s246, 8
      %s248 = scalar_lea.vmem %s3, %s247
      %p249 = pneg %p142
      %p250 = pneg %p139
      %s251 = smul.u32 72, %s17
      %p252 = scmp.lt.s32.totalorder %s251, 287
      %s253 = scalar_select %p252, %s251, 287
      %s254 = smul.addr %s253, 8
      %s255 = scalar_lea.vmem %s4, %s254
      %p256 = pneg %p168
      %p257 = pneg %p165
      %s258 = smul.u32 72, %s17
      %p259 = scmp.lt.s32.totalorder %s258, 287
      %s260 = scalar_select %p259, %s258, 287
      %s261 = smul.addr %s260, 8
      %s262 = scalar_lea.vmem %s5, %s261
      %s263 = smul.u32 72, %s17
      %p264 = scmp.lt.s32.totalorder %s263, 287
      %s265 = scalar_select %p264, %s263, 287
      %s266 = smul.addr %s265, 8
      %s267 = scalar_lea.vmem %s0, %s266
      %s268 = smul.u32 72, %s17
      %s269 = smul.u32 72, %s17
      %p270 = scmp.lt.s32.totalorder %s269, 287
      %s271 = scalar_select %p270, %s269, 287
      %s272 = smul.addr %s271, 8
      %s273 = scalar_lea.vmem %s1, %s272
      %s274 = smul.u32 72, %s17
      %s275 = smul.u32 72, %s17
      %p276 = scmp.lt.s32.totalorder %s275, 287
      %s277 = scalar_select %p276, %s275, 287
      %s278 = smul.addr %s277, 8
      %s279 = scalar_lea.vmem %s2, %s278
      %s280 = smul.u32 72, %s17
      %s281 = smul.u32 72, %s17
      %p282 = scmp.lt.s32.totalorder %s281, 287
      %s283 = scalar_select %p282, %s281, 287
      %s284 = smul.addr %s283, 8
      %s285 = scalar_lea.vmem %s3, %s284
      %s286 = smul.u32 72, %s17
      %s287 = smul.u32 72, %s17
      %p288 = scmp.lt.s32.totalorder %s287, 287
      %s289 = scalar_select %p288, %s287, 287
      %s290 = smul.addr %s289, 8
      %s291 = scalar_lea.vmem %s4, %s290
      %s292 = smul.u32 72, %s17
      %s293 = smul.u32 72, %s17
      %p294 = scmp.lt.s32.totalorder %s293, 287
      %s295 = scalar_select %p294, %s293, 287
      %s296 = smul.addr %s295, 8
      %s297 = scalar_lea.vmem %s5, %s296
      %s298 = smul.u32 72, %s17
      %v299 = vld [vmem:[%s267] sm:$0xff]
      %v300 = vld [vmem:[%s267 + $0x8] sm:$0xff]
      %v301 = vld [vmem:[%s267 + $0x10] sm:$0xff]
      %v302 = vld [vmem:[%s267 + $0x18] sm:$0xff]
      %v303 = vld [vmem:[%s267 + $0x20] sm:$0xff]
      %v304 = vld [vmem:[%s267 + $0x28] sm:$0xff]
      %v305 = vld [vmem:[%s267 + $0x30] sm:$0xff]
      %v306 = vld [vmem:[%s267 + $0x38] sm:$0xff]
      %v307 = vld [vmem:[%s267 + $0x40] sm:$0xff]
      %v308 = vld [vmem:[%s267 + $0x48] sm:$0xff]
      %v309 = vld [vmem:[%s267 + $0x50] sm:$0xff]
      %v310 = vld [vmem:[%s267 + $0x58] sm:$0xff]
      %v311 = vld [vmem:[%s267 + $0x60] sm:$0xff]
      %v312 = vld [vmem:[%s267 + $0x68] sm:$0xff]
      %v313 = vld [vmem:[%s267 + $0x70] sm:$0xff]
      %v314 = vld [vmem:[%s267 + $0x78] sm:$0xff]
      %v315 = vld [vmem:[%s267 + $0x80] sm:$0xff]
      %v316 = vld [vmem:[%s267 + $0x88] sm:$0xff]
      %v317 = vld [vmem:[%s267 + $0x90] sm:$0xff]
      %v318 = vld [vmem:[%s267 + $0x98] sm:$0xff]
      %v319 = vld [vmem:[%s267 + $0xa0] sm:$0xff]
      %v320 = vld [vmem:[%s267 + $0xa8] sm:$0xff]
      %v321 = vld [vmem:[%s267 + $0xb0] sm:$0xff]
      %v322 = vld [vmem:[%s267 + $0xb8] sm:$0xff]
      %vm323 = vcmask 400384
      %v324 = vsel %vm323, %v299, 0.0
      %325 = vadd.xlane.f32.xlu0 %v324
      %v326 = vpop.xlane.xlu0 %325
      %v327 = vsel %vm323, %v300, 0.0
      %328 = vadd.xlane.f32.xlu0 %v327
      %v329 = vpop.xlane.xlu0 %328
      %v330 = vsel %vm323, %v301, 0.0
      %331 = vadd.xlane.f32.xlu0 %v330
      %v332 = vpop.xlane.xlu0 %331
      %v333 = vsel %vm323, %v302, 0.0
      %334 = vadd.xlane.f32.xlu0 %v333
      %v335 = vpop.xlane.xlu0 %334
      %v336 = vsel %vm323, %v303, 0.0
      %337 = vadd.xlane.f32.xlu0 %v336
      %v338 = vpop.xlane.xlu0 %337
      %v339 = vsel %vm323, %v304, 0.0
      %340 = vadd.xlane.f32.xlu0 %v339
      %v341 = vpop.xlane.xlu0 %340
      %v342 = vsel %vm323, %v305, 0.0
      %343 = vadd.xlane.f32.xlu0 %v342
      %v344 = vpop.xlane.xlu0 %343
      %v345 = vsel %vm323, %v306, 0.0
      %346 = vadd.xlane.f32.xlu0 %v345
      %v347 = vpop.xlane.xlu0 %346
      %v348 = vsel %vm323, %v307, 0.0
      %349 = vadd.xlane.f32.xlu0 %v348
      %v350 = vpop.xlane.xlu0 %349
      %v351 = vsel %vm323, %v308, 0.0
      %352 = vadd.xlane.f32.xlu0 %v351
      %v353 = vpop.xlane.xlu0 %352
      %v354 = vsel %vm323, %v309, 0.0
      %355 = vadd.xlane.f32.xlu0 %v354
      %v356 = vpop.xlane.xlu0 %355
      %v357 = vsel %vm323, %v310, 0.0
      %358 = vadd.xlane.f32.xlu0 %v357
      %v359 = vpop.xlane.xlu0 %358
      %v360 = vsel %vm323, %v311, 0.0
      %361 = vadd.xlane.f32.xlu0 %v360
      %v362 = vpop.xlane.xlu0 %361
      %v363 = vsel %vm323, %v312, 0.0
      %364 = vadd.xlane.f32.xlu0 %v363
      %v365 = vpop.xlane.xlu0 %364
      %v366 = vsel %vm323, %v313, 0.0
      %367 = vadd.xlane.f32.xlu0 %v366
      %v368 = vpop.xlane.xlu0 %367
      %v369 = vsel %vm323, %v314, 0.0
      %370 = vadd.xlane.f32.xlu0 %v369
      %v371 = vpop.xlane.xlu0 %370
      %v372 = vsel %vm323, %v315, 0.0
      %373 = vadd.xlane.f32.xlu0 %v372
      %v374 = vpop.xlane.xlu0 %373
      %v375 = vsel %vm323, %v316, 0.0
      %376 = vadd.xlane.f32.xlu0 %v375
      %v377 = vpop.xlane.xlu0 %376
      %v378 = vsel %vm323, %v317, 0.0
      %379 = vadd.xlane.f32.xlu0 %v378
      %v380 = vpop.xlane.xlu0 %379
      %v381 = vsel %vm323, %v318, 0.0
      %382 = vadd.xlane.f32.xlu0 %v381
      %v383 = vpop.xlane.xlu0 %382
      %v384 = vsel %vm323, %v319, 0.0
      %385 = vadd.xlane.f32.xlu0 %v384
      %v386 = vpop.xlane.xlu0 %385
      %v387 = vsel %vm323, %v320, 0.0
      %388 = vadd.xlane.f32.xlu0 %v387
      %v389 = vpop.xlane.xlu0 %388
      %v390 = vsel %vm323, %v321, 0.0
      %391 = vadd.xlane.f32.xlu0 %v390
      %v392 = vpop.xlane.xlu0 %391
      %v393 = vsel %vm323, %v322, 0.0
      %394 = vadd.xlane.f32.xlu0 %v393
      %v395 = vpop.xlane.xlu0 %394
      %v396 = vmul.f32 %v326, 0.020408163
      %v397 = vmul.f32 %v329, 0.020408163
      %v398 = vmul.f32 %v332, 0.020408163
      %v399 = vmul.f32 %v335, 0.020408163
      %v400 = vmul.f32 %v338, 0.020408163
      %v401 = vmul.f32 %v341, 0.020408163
      %v402 = vmul.f32 %v344, 0.020408163
      %v403 = vmul.f32 %v347, 0.020408163
      %v404 = vmul.f32 %v350, 0.020408163
      %v405 = vmul.f32 %v353, 0.020408163
      %v406 = vmul.f32 %v356, 0.020408163
      %v407 = vmul.f32 %v359, 0.020408163
      %v408 = vmul.f32 %v362, 0.020408163
      %v409 = vmul.f32 %v365, 0.020408163
      %v410 = vmul.f32 %v368, 0.020408163
      %v411 = vmul.f32 %v371, 0.020408163
      %v412 = vmul.f32 %v374, 0.020408163
      %v413 = vmul.f32 %v377, 0.020408163
      %v414 = vmul.f32 %v380, 0.020408163
      %v415 = vmul.f32 %v383, 0.020408163
      %v416 = vmul.f32 %v386, 0.020408163
      %v417 = vmul.f32 %v389, 0.020408163
      %v418 = vmul.f32 %v392, 0.020408163
      %v419 = vmul.f32 %v395, 0.020408163
      %v420 = vsub.f32 %v299, %v396
      %v421 = vsub.f32 %v300, %v397
      %v422 = vsub.f32 %v301, %v398
      %v423 = vsub.f32 %v302, %v399
      %v424 = vsub.f32 %v303, %v400
      %v425 = vsub.f32 %v304, %v401
      %v426 = vsub.f32 %v305, %v402
      %v427 = vsub.f32 %v306, %v403
      %v428 = vsub.f32 %v307, %v404
      %v429 = vsub.f32 %v308, %v405
      %v430 = vsub.f32 %v309, %v406
      %v431 = vsub.f32 %v310, %v407
      %v432 = vsub.f32 %v311, %v408
      %v433 = vsub.f32 %v312, %v409
      %v434 = vsub.f32 %v313, %v410
      %v435 = vsub.f32 %v314, %v411
      %v436 = vsub.f32 %v315, %v412
      %v437 = vsub.f32 %v316, %v413
      %v438 = vsub.f32 %v317, %v414
      %v439 = vsub.f32 %v318, %v415
      %v440 = vsub.f32 %v319, %v416
      %v441 = vsub.f32 %v320, %v417
      %v442 = vsub.f32 %v321, %v418
      %v443 = vsub.f32 %v322, %v419
      %v444 = vmul.f32 %v420, %v420
      %v445 = vmul.f32 %v421, %v421
      %v446 = vmul.f32 %v422, %v422
      %v447 = vmul.f32 %v423, %v423
      %v448 = vmul.f32 %v424, %v424
      %v449 = vmul.f32 %v425, %v425
      %v450 = vmul.f32 %v426, %v426
      %v451 = vmul.f32 %v427, %v427
      %v452 = vmul.f32 %v428, %v428
      %v453 = vmul.f32 %v429, %v429
      %v454 = vmul.f32 %v430, %v430
      %v455 = vmul.f32 %v431, %v431
      %v456 = vmul.f32 %v432, %v432
      %v457 = vmul.f32 %v433, %v433
      %v458 = vmul.f32 %v434, %v434
      %v459 = vmul.f32 %v435, %v435
      %v460 = vmul.f32 %v436, %v436
      %v461 = vmul.f32 %v437, %v437
      %v462 = vmul.f32 %v438, %v438
      %v463 = vmul.f32 %v439, %v439
      %v464 = vmul.f32 %v440, %v440
      %v465 = vmul.f32 %v441, %v441
      %v466 = vmul.f32 %v442, %v442
      %v467 = vmul.f32 %v443, %v443
      %v468 = vsel %vm323, %v444, 0.0
      %469 = vadd.xlane.f32.xlu0 %v468
      %v470 = vpop.xlane.xlu0 %469
      %v471 = vsel %vm323, %v445, 0.0
      %472 = vadd.xlane.f32.xlu0 %v471
      %v473 = vpop.xlane.xlu0 %472
      %v474 = vsel %vm323, %v446, 0.0
      %475 = vadd.xlane.f32.xlu0 %v474
      %v476 = vpop.xlane.xlu0 %475
      %v477 = vsel %vm323, %v447, 0.0
      %478 = vadd.xlane.f32.xlu0 %v477
      %v479 = vpop.xlane.xlu0 %478
      %v480 = vsel %vm323, %v448, 0.0
      %481 = vadd.xlane.f32.xlu0 %v480
      %v482 = vpop.xlane.xlu0 %481
      %v483 = vsel %vm323, %v449, 0.0
      %484 = vadd.xlane.f32.xlu0 %v483
      %v485 = vpop.xlane.xlu0 %484
      %v486 = vsel %vm323, %v450, 0.0
      %487 = vadd.xlane.f32.xlu0 %v486
      %v488 = vpop.xlane.xlu0 %487
      %v489 = vsel %vm323, %v451, 0.0
      %490 = vadd.xlane.f32.xlu0 %v489
      %v491 = vpop.xlane.xlu0 %490
      %v492 = vsel %vm323, %v452, 0.0
      %493 = vadd.xlane.f32.xlu0 %v492
      %v494 = vpop.xlane.xlu0 %493
      %v495 = vsel %vm323, %v453, 0.0
      %496 = vadd.xlane.f32.xlu0 %v495
      %v497 = vpop.xlane.xlu0 %496
      %v498 = vsel %vm323, %v454, 0.0
      %499 = vadd.xlane.f32.xlu0 %v498
      %v500 = vpop.xlane.xlu0 %499
      %v501 = vsel %vm323, %v455, 0.0
      %502 = vadd.xlane.f32.xlu0 %v501
      %v503 = vpop.xlane.xlu0 %502
      %v504 = vsel %vm323, %v456, 0.0
      %505 = vadd.xlane.f32.xlu0 %v504
      %v506 = vpop.xlane.xlu0 %505
      %v507 = vsel %vm323, %v457, 0.0
      %508 = vadd.xlane.f32.xlu0 %v507
      %v509 = vpop.xlane.xlu0 %508
      %v510 = vsel %vm323, %v458, 0.0
      %511 = vadd.xlane.f32.xlu0 %v510
      %v512 = vpop.xlane.xlu0 %511
      %v513 = vsel %vm323, %v459, 0.0
      %514 = vadd.xlane.f32.xlu0 %v513
      %v515 = vpop.xlane.xlu0 %514
      %v516 = vsel %vm323, %v460, 0.0
      %517 = vadd.xlane.f32.xlu0 %v516
      %v518 = vpop.xlane.xlu0 %517
      %v519 = vsel %vm323, %v461, 0.0
      %520 = vadd.xlane.f32.xlu0 %v519
      %v521 = vpop.xlane.xlu0 %520
      %v522 = vsel %vm323, %v462, 0.0
      %523 = vadd.xlane.f32.xlu0 %v522
      %v524 = vpop.xlane.xlu0 %523
      %v525 = vsel %vm323, %v463, 0.0
      %526 = vadd.xlane.f32.xlu0 %v525
      %v527 = vpop.xlane.xlu0 %526
      %v528 = vsel %vm323, %v464, 0.0
      %529 = vadd.xlane.f32.xlu0 %v528
      %v530 = vpop.xlane.xlu0 %529
      %v531 = vsel %vm323, %v465, 0.0
      %532 = vadd.xlane.f32.xlu0 %v531
      %v533 = vpop.xlane.xlu0 %532
      %v534 = vsel %vm323, %v466, 0.0
      %535 = vadd.xlane.f32.xlu0 %v534
      %v536 = vpop.xlane.xlu0 %535
      %v537 = vsel %vm323, %v467, 0.0
      %538 = vadd.xlane.f32.xlu0 %v537
      %v539 = vpop.xlane.xlu0 %538
      %v540 = vmul.f32 %v470, 0.020408163
      %v541 = vmul.f32 %v473, 0.020408163
      %v542 = vmul.f32 %v476, 0.020408163
      %v543 = vmul.f32 %v479, 0.020408163
      %v544 = vmul.f32 %v482, 0.020408163
      %v545 = vmul.f32 %v485, 0.020408163
      %v546 = vmul.f32 %v488, 0.020408163
      %v547 = vmul.f32 %v491, 0.020408163
      %v548 = vmul.f32 %v494, 0.020408163
      %v549 = vmul.f32 %v497, 0.020408163
      %v550 = vmul.f32 %v500, 0.020408163
      %v551 = vmul.f32 %v503, 0.020408163
      %v552 = vmul.f32 %v506, 0.020408163
      %v553 = vmul.f32 %v509, 0.020408163
      %v554 = vmul.f32 %v512, 0.020408163
      %v555 = vmul.f32 %v515, 0.020408163
      %v556 = vmul.f32 %v518, 0.020408163
      %v557 = vmul.f32 %v521, 0.020408163
      %v558 = vmul.f32 %v524, 0.020408163
      %v559 = vmul.f32 %v527, 0.020408163
      %v560 = vmul.f32 %v530, 0.020408163
      %v561 = vmul.f32 %v533, 0.020408163
      %v562 = vmul.f32 %v536, 0.020408163
      %v563 = vmul.f32 %v539, 0.020408163
      %v564 = vadd.f32 %v540, 1e-05
      %v565 = vadd.f32 %v541, 1e-05
      %v566 = vadd.f32 %v542, 1e-05
      %v567 = vadd.f32 %v543, 1e-05
      %v568 = vadd.f32 %v544, 1e-05
      %v569 = vadd.f32 %v545, 1e-05
      %v570 = vadd.f32 %v546, 1e-05
      %v571 = vadd.f32 %v547, 1e-05
      %v572 = vadd.f32 %v548, 1e-05
      %v573 = vadd.f32 %v549, 1e-05
      %v574 = vadd.f32 %v550, 1e-05
      %v575 = vadd.f32 %v551, 1e-05
      %v576 = vadd.f32 %v552, 1e-05
      %v577 = vadd.f32 %v553, 1e-05
      %v578 = vadd.f32 %v554, 1e-05
      %v579 = vadd.f32 %v555, 1e-05
      %v580 = vadd.f32 %v556, 1e-05
      %v581 = vadd.f32 %v557, 1e-05
      %v582 = vadd.f32 %v558, 1e-05
      %v583 = vadd.f32 %v559, 1e-05
      %v584 = vadd.f32 %v560, 1e-05
      %v585 = vadd.f32 %v561, 1e-05
      %v586 = vadd.f32 %v562, 1e-05
      %v587 = vadd.f32 %v563, 1e-05
      %v588 = vrsqrt.pop %v564
      %v589 = vrsqrt.pop %v565
      %v590 = vrsqrt.pop %v566
      %v591 = vrsqrt.pop %v567
      %v592 = vrsqrt.pop %v568
      %v593 = vrsqrt.pop %v569
      %v594 = vrsqrt.pop %v570
      %v595 = vrsqrt.pop %v571
      %v596 = vrsqrt.pop %v572
      %v597 = vrsqrt.pop %v573
      %v598 = vrsqrt.pop %v574
      %v599 = vrsqrt.pop %v575
      %v600 = vrsqrt.pop %v576
      %v601 = vrsqrt.pop %v577
      %v602 = vrsqrt.pop %v578
      %v603 = vrsqrt.pop %v579
      %v604 = vrsqrt.pop %v580
      %v605 = vrsqrt.pop %v581
      %v606 = vrsqrt.pop %v582
      %v607 = vrsqrt.pop %v583
      %v608 = vrsqrt.pop %v584
      %v609 = vrsqrt.pop %v585
      %v610 = vrsqrt.pop %v586
      %v611 = vrsqrt.pop %v587
      %v612 = vld [vmem:[%s273] sm:$0xff]
      %v613 = vld [vmem:[%s273 + $0x8] sm:$0xff]
      %v614 = vld [vmem:[%s273 + $0x10] sm:$0xff]
      %v615 = vld [vmem:[%s273 + $0x18] sm:$0xff]
      %v616 = vld [vmem:[%s273 + $0x20] sm:$0xff]
      %v617 = vld [vmem:[%s273 + $0x28] sm:$0xff]
      %v618 = vld [vmem:[%s273 + $0x30] sm:$0xff]
      %v619 = vld [vmem:[%s273 + $0x38] sm:$0xff]
      %v620 = vld [vmem:[%s273 + $0x40] sm:$0xff]
      %v621 = vld [vmem:[%s273 + $0x48] sm:$0xff]
      %v622 = vld [vmem:[%s273 + $0x50] sm:$0xff]
      %v623 = vld [vmem:[%s273 + $0x58] sm:$0xff]
      %v624 = vld [vmem:[%s273 + $0x60] sm:$0xff]
      %v625 = vld [vmem:[%s273 + $0x68] sm:$0xff]
      %v626 = vld [vmem:[%s273 + $0x70] sm:$0xff]
      %v627 = vld [vmem:[%s273 + $0x78] sm:$0xff]
      %v628 = vld [vmem:[%s273 + $0x80] sm:$0xff]
      %v629 = vld [vmem:[%s273 + $0x88] sm:$0xff]
      %v630 = vld [vmem:[%s273 + $0x90] sm:$0xff]
      %v631 = vld [vmem:[%s273 + $0x98] sm:$0xff]
      %v632 = vld [vmem:[%s273 + $0xa0] sm:$0xff]
      %v633 = vld [vmem:[%s273 + $0xa8] sm:$0xff]
      %v634 = vld [vmem:[%s273 + $0xb0] sm:$0xff]
      %v635 = vld [vmem:[%s273 + $0xb8] sm:$0xff]
      %v636 = vmul.f32 %v588, %v612
      %v637 = vmul.f32 %v589, %v613
      %v638 = vmul.f32 %v590, %v614
      %v639 = vmul.f32 %v591, %v615
      %v640 = vmul.f32 %v592, %v616
      %v641 = vmul.f32 %v593, %v617
      %v642 = vmul.f32 %v594, %v618
      %v643 = vmul.f32 %v595, %v619
      %v644 = vmul.f32 %v596, %v620
      %v645 = vmul.f32 %v597, %v621
      %v646 = vmul.f32 %v598, %v622
      %v647 = vmul.f32 %v599, %v623
      %v648 = vmul.f32 %v600, %v624
      %v649 = vmul.f32 %v601, %v625
      %v650 = vmul.f32 %v602, %v626
      %v651 = vmul.f32 %v603, %v627
      %v652 = vmul.f32 %v604, %v628
      %v653 = vmul.f32 %v605, %v629
      %v654 = vmul.f32 %v606, %v630
      %v655 = vmul.f32 %v607, %v631
      %v656 = vmul.f32 %v608, %v632
      %v657 = vmul.f32 %v609, %v633
      %v658 = vmul.f32 %v610, %v634
      %v659 = vmul.f32 %v611, %v635
      %661 = vset.pattern.permute.xlu0 0
      %662 = vperm.xlu0 %661, %v636
      %v663 = vpop.permute.xlu0 %662
      %666 = vset.pattern.permute.xlu0 0
      %667 = vperm.xlu0 %666, %v637
      %v668 = vpop.permute.xlu0 %667
      %671 = vset.pattern.permute.xlu0 0
      %672 = vperm.xlu0 %671, %v638
      %v673 = vpop.permute.xlu0 %672
      %676 = vset.pattern.permute.xlu0 0
      %677 = vperm.xlu0 %676, %v639
      %v678 = vpop.permute.xlu0 %677
      %681 = vset.pattern.permute.xlu0 0
      %682 = vperm.xlu0 %681, %v640
      %v683 = vpop.permute.xlu0 %682
      %686 = vset.pattern.permute.xlu0 0
      %687 = vperm.xlu0 %686, %v641
      %v688 = vpop.permute.xlu0 %687
      %691 = vset.pattern.permute.xlu0 0
      %692 = vperm.xlu0 %691, %v642
      %v693 = vpop.permute.xlu0 %692
      %696 = vset.pattern.permute.xlu0 0
      %697 = vperm.xlu0 %696, %v643
      %v698 = vpop.permute.xlu0 %697
      %701 = vset.pattern.permute.xlu0 0
      %702 = vperm.xlu0 %701, %v644
      %v703 = vpop.permute.xlu0 %702
      %706 = vset.pattern.permute.xlu0 0
      %707 = vperm.xlu0 %706, %v645
      %v708 = vpop.permute.xlu0 %707
      %711 = vset.pattern.permute.xlu0 0
      %712 = vperm.xlu0 %711, %v646
      %v713 = vpop.permute.xlu0 %712
      %716 = vset.pattern.permute.xlu0 0
      %717 = vperm.xlu0 %716, %v647
      %v718 = vpop.permute.xlu0 %717
      %721 = vset.pattern.permute.xlu0 0
      %722 = vperm.xlu0 %721, %v648
      %v723 = vpop.permute.xlu0 %722
      %726 = vset.pattern.permute.xlu0 0
      %727 = vperm.xlu0 %726, %v649
      %v728 = vpop.permute.xlu0 %727
      %731 = vset.pattern.permute.xlu0 0
      %732 = vperm.xlu0 %731, %v650
      %v733 = vpop.permute.xlu0 %732
      %736 = vset.pattern.permute.xlu0 0
      %737 = vperm.xlu0 %736, %v651
      %v738 = vpop.permute.xlu0 %737
      %741 = vset.pattern.permute.xlu0 0
      %742 = vperm.xlu0 %741, %v652
      %v743 = vpop.permute.xlu0 %742
      %746 = vset.pattern.permute.xlu0 0
      %747 = vperm.xlu0 %746, %v653
      %v748 = vpop.permute.xlu0 %747
      %751 = vset.pattern.permute.xlu0 0
      %752 = vperm.xlu0 %751, %v654
      %v753 = vpop.permute.xlu0 %752
      %756 = vset.pattern.permute.xlu0 0
      %757 = vperm.xlu0 %756, %v655
      %v758 = vpop.permute.xlu0 %757
      %761 = vset.pattern.permute.xlu0 0
      %762 = vperm.xlu0 %761, %v656
      %v763 = vpop.permute.xlu0 %762
      %766 = vset.pattern.permute.xlu0 0
      %767 = vperm.xlu0 %766, %v657
      %v768 = vpop.permute.xlu0 %767
      %771 = vset.pattern.permute.xlu0 0
      %772 = vperm.xlu0 %771, %v658
      %v773 = vpop.permute.xlu0 %772
      %776 = vset.pattern.permute.xlu0 0
      %777 = vperm.xlu0 %776, %v659
      %v778 = vpop.permute.xlu0 %777
      %v780 = vmul.f32 %v420, %v663
      %v781 = vmul.f32 %v421, %v668
      %v782 = vmul.f32 %v422, %v673
      %v783 = vmul.f32 %v423, %v678
      %v784 = vmul.f32 %v424, %v683
      %v785 = vmul.f32 %v425, %v688
      %v786 = vmul.f32 %v426, %v693
      %v787 = vmul.f32 %v427, %v698
      %v788 = vmul.f32 %v428, %v703
      %v789 = vmul.f32 %v429, %v708
      %v790 = vmul.f32 %v430, %v713
      %v791 = vmul.f32 %v431, %v718
      %v792 = vmul.f32 %v432, %v723
      %v793 = vmul.f32 %v433, %v728
      %v794 = vmul.f32 %v434, %v733
      %v795 = vmul.f32 %v435, %v738
      %v796 = vmul.f32 %v436, %v743
      %v797 = vmul.f32 %v437, %v748
      %v798 = vmul.f32 %v438, %v753
      %v799 = vmul.f32 %v439, %v758
      %v800 = vmul.f32 %v440, %v763
      %v801 = vmul.f32 %v441, %v768
      %v802 = vmul.f32 %v442, %v773
      %v803 = vmul.f32 %v443, %v778
      %v804 = vld [vmem:[%s279] sm:$0xff]
      %v805 = vld [vmem:[%s279 + $0x8] sm:$0xff]
      %v806 = vld [vmem:[%s279 + $0x10] sm:$0xff]
      %v807 = vld [vmem:[%s279 + $0x18] sm:$0xff]
      %v808 = vld [vmem:[%s279 + $0x20] sm:$0xff]
      %v809 = vld [vmem:[%s279 + $0x28] sm:$0xff]
      %v810 = vld [vmem:[%s279 + $0x30] sm:$0xff]
      %v811 = vld [vmem:[%s279 + $0x38] sm:$0xff]
      %v812 = vld [vmem:[%s279 + $0x40] sm:$0xff]
      %v813 = vld [vmem:[%s279 + $0x48] sm:$0xff]
      %v814 = vld [vmem:[%s279 + $0x50] sm:$0xff]
      %v815 = vld [vmem:[%s279 + $0x58] sm:$0xff]
      %v816 = vld [vmem:[%s279 + $0x60] sm:$0xff]
      %v817 = vld [vmem:[%s279 + $0x68] sm:$0xff]
      %v818 = vld [vmem:[%s279 + $0x70] sm:$0xff]
      %v819 = vld [vmem:[%s279 + $0x78] sm:$0xff]
      %v820 = vld [vmem:[%s279 + $0x80] sm:$0xff]
      %v821 = vld [vmem:[%s279 + $0x88] sm:$0xff]
      %v822 = vld [vmem:[%s279 + $0x90] sm:$0xff]
      %v823 = vld [vmem:[%s279 + $0x98] sm:$0xff]
      %v824 = vld [vmem:[%s279 + $0xa0] sm:$0xff]
      %v825 = vld [vmem:[%s279 + $0xa8] sm:$0xff]
      %v826 = vld [vmem:[%s279 + $0xb0] sm:$0xff]
      %v827 = vld [vmem:[%s279 + $0xb8] sm:$0xff]
      %829 = vset.pattern.permute.xlu0 0
      %830 = vperm.xlu0 %829, %v804
      %v831 = vpop.permute.xlu0 %830
      %834 = vset.pattern.permute.xlu0 0
      %835 = vperm.xlu0 %834, %v805
      %v836 = vpop.permute.xlu0 %835
      %839 = vset.pattern.permute.xlu0 0
      %840 = vperm.xlu0 %839, %v806
      %v841 = vpop.permute.xlu0 %840
      %844 = vset.pattern.permute.xlu0 0
      %845 = vperm.xlu0 %844, %v807
      %v846 = vpop.permute.xlu0 %845
      %849 = vset.pattern.permute.xlu0 0
      %850 = vperm.xlu0 %849, %v808
      %v851 = vpop.permute.xlu0 %850
      %854 = vset.pattern.permute.xlu0 0
      %855 = vperm.xlu0 %854, %v809
      %v856 = vpop.permute.xlu0 %855
      %859 = vset.pattern.permute.xlu0 0
      %860 = vperm.xlu0 %859, %v810
      %v861 = vpop.permute.xlu0 %860
      %864 = vset.pattern.permute.xlu0 0
      %865 = vperm.xlu0 %864, %v811
      %v866 = vpop.permute.xlu0 %865
      %869 = vset.pattern.permute.xlu0 0
      %870 = vperm.xlu0 %869, %v812
      %v871 = vpop.permute.xlu0 %870
      %874 = vset.pattern.permute.xlu0 0
      %875 = vperm.xlu0 %874, %v813
      %v876 = vpop.permute.xlu0 %875
      %879 = vset.pattern.permute.xlu0 0
      %880 = vperm.xlu0 %879, %v814
      %v881 = vpop.permute.xlu0 %880
      %884 = vset.pattern.permute.xlu0 0
      %885 = vperm.xlu0 %884, %v815
      %v886 = vpop.permute.xlu0 %885
      %889 = vset.pattern.permute.xlu0 0
      %890 = vperm.xlu0 %889, %v816
      %v891 = vpop.permute.xlu0 %890
      %894 = vset.pattern.permute.xlu0 0
      %895 = vperm.xlu0 %894, %v817
      %v896 = vpop.permute.xlu0 %895
      %899 = vset.pattern.permute.xlu0 0
      %900 = vperm.xlu0 %899, %v818
      %v901 = vpop.permute.xlu0 %900
      %904 = vset.pattern.permute.xlu0 0
      %905 = vperm.xlu0 %904, %v819
      %v906 = vpop.permute.xlu0 %905
      %909 = vset.pattern.permute.xlu0 0
      %910 = vperm.xlu0 %909, %v820
      %v911 = vpop.permute.xlu0 %910
      %914 = vset.pattern.permute.xlu0 0
      %915 = vperm.xlu0 %914, %v821
      %v916 = vpop.permute.xlu0 %915
      %919 = vset.pattern.permute.xlu0 0
      %920 = vperm.xlu0 %919, %v822
      %v921 = vpop.permute.xlu0 %920
      %924 = vset.pattern.permute.xlu0 0
      %925 = vperm.xlu0 %924, %v823
      %v926 = vpop.permute.xlu0 %925
      %929 = vset.pattern.permute.xlu0 0
      %930 = vperm.xlu0 %929, %v824
      %v931 = vpop.permute.xlu0 %930
      %934 = vset.pattern.permute.xlu0 0
      %935 = vperm.xlu0 %934, %v825
      %v936 = vpop.permute.xlu0 %935
      %939 = vset.pattern.permute.xlu0 0
      %940 = vperm.xlu0 %939, %v826
      %v941 = vpop.permute.xlu0 %940
      %944 = vset.pattern.permute.xlu0 0
      %945 = vperm.xlu0 %944, %v827
      %v946 = vpop.permute.xlu0 %945
      %v948 = vadd.f32 %v780, %v831
      %v949 = vadd.f32 %v781, %v836
      %v950 = vadd.f32 %v782, %v841
      %v951 = vadd.f32 %v783, %v846
      %v952 = vadd.f32 %v784, %v851
      %v953 = vadd.f32 %v785, %v856
      %v954 = vadd.f32 %v786, %v861
      %v955 = vadd.f32 %v787, %v866
      %v956 = vadd.f32 %v788, %v871
      %v957 = vadd.f32 %v789, %v876
      %v958 = vadd.f32 %v790, %v881
      %v959 = vadd.f32 %v791, %v886
      %v960 = vadd.f32 %v792, %v891
      %v961 = vadd.f32 %v793, %v896
      %v962 = vadd.f32 %v794, %v901
      %v963 = vadd.f32 %v795, %v906
      %v964 = vadd.f32 %v796, %v911
      %v965 = vadd.f32 %v797, %v916
      %v966 = vadd.f32 %v798, %v921
      %v967 = vadd.f32 %v799, %v926
      %v968 = vadd.f32 %v800, %v931
      %v969 = vadd.f32 %v801, %v936
      %v970 = vadd.f32 %v802, %v941
      %v971 = vadd.f32 %v803, %v946
      %972 = vst.msk [vmem:[%s285] sm:$0xff] %vm323, %v948
      %973 = vst.msk [vmem:[%s285 + $0x8] sm:$0xff] %vm323, %v949
      %974 = vst.msk [vmem:[%s285 + $0x10] sm:$0xff] %vm323, %v950
      %975 = vst.msk [vmem:[%s285 + $0x18] sm:$0xff] %vm323, %v951
      %976 = vst.msk [vmem:[%s285 + $0x20] sm:$0xff] %vm323, %v952
      %977 = vst.msk [vmem:[%s285 + $0x28] sm:$0xff] %vm323, %v953
      %978 = vst.msk [vmem:[%s285 + $0x30] sm:$0xff] %vm323, %v954
      %979 = vst.msk [vmem:[%s285 + $0x38] sm:$0xff] %vm323, %v955
      %980 = vst.msk [vmem:[%s285 + $0x40] sm:$0xff] %vm323, %v956
      %981 = vst.msk [vmem:[%s285 + $0x48] sm:$0xff] %vm323, %v957
      %982 = vst.msk [vmem:[%s285 + $0x50] sm:$0xff] %vm323, %v958
      %983 = vst.msk [vmem:[%s285 + $0x58] sm:$0xff] %vm323, %v959
      %984 = vst.msk [vmem:[%s285 + $0x60] sm:$0xff] %vm323, %v960
      %985 = vst.msk [vmem:[%s285 + $0x68] sm:$0xff] %vm323, %v961
      %986 = vst.msk [vmem:[%s285 + $0x70] sm:$0xff] %vm323, %v962
      %987 = vst.msk [vmem:[%s285 + $0x78] sm:$0xff] %vm323, %v963
      %988 = vst.msk [vmem:[%s285 + $0x80] sm:$0xff] %vm323, %v964
      %989 = vst.msk [vmem:[%s285 + $0x88] sm:$0xff] %vm323, %v965
      %990 = vst.msk [vmem:[%s285 + $0x90] sm:$0xff] %vm323, %v966
      %991 = vst.msk [vmem:[%s285 + $0x98] sm:$0xff] %vm323, %v967
      %992 = vst.msk [vmem:[%s285 + $0xa0] sm:$0xff] %vm323, %v968
      %993 = vst.msk [vmem:[%s285 + $0xa8] sm:$0xff] %vm323, %v969
      %994 = vst.msk [vmem:[%s285 + $0xb0] sm:$0xff] %vm323, %v970
      %995 = vst.msk [vmem:[%s285 + $0xb8] sm:$0xff] %vm323, %v971
      %vm996 = vcmask 7168
      %997 = vst.msk [vmem:[%s291] sm:$0xff] %vm996, %v396
      %998 = vst.msk [vmem:[%s291 + $0x8] sm:$0xff] %vm996, %v397
      %999 = vst.msk [vmem:[%s291 + $0x10] sm:$0xff] %vm996, %v398
      %1000 = vst.msk [vmem:[%s291 + $0x18] sm:$0xff] %vm996, %v399
      %1001 = vst.msk [vmem:[%s291 + $0x20] sm:$0xff] %vm996, %v400
      %1002 = vst.msk [vmem:[%s291 + $0x28] sm:$0xff] %vm996, %v401
      %1003 = vst.msk [vmem:[%s291 + $0x30] sm:$0xff] %vm996, %v402
      %1004 = vst.msk [vmem:[%s291 + $0x38] sm:$0xff] %vm996, %v403
      %1005 = vst.msk [vmem:[%s291 + $0x40] sm:$0xff] %vm996, %v404
      %1006 = vst.msk [vmem:[%s291 + $0x48] sm:$0xff] %vm996, %v405
      %1007 = vst.msk [vmem:[%s291 + $0x50] sm:$0xff] %vm996, %v406
      %1008 = vst.msk [vmem:[%s291 + $0x58] sm:$0xff] %vm996, %v407
      %1009 = vst.msk [vmem:[%s291 + $0x60] sm:$0xff] %vm996, %v408
      %1010 = vst.msk [vmem:[%s291 + $0x68] sm:$0xff] %vm996, %v409
      %1011 = vst.msk [vmem:[%s291 + $0x70] sm:$0xff] %vm996, %v410
      %1012 = vst.msk [vmem:[%s291 + $0x78] sm:$0xff] %vm996, %v411
      %1013 = vst.msk [vmem:[%s291 + $0x80] sm:$0xff] %vm996, %v412
      %1014 = vst.msk [vmem:[%s291 + $0x88] sm:$0xff] %vm996, %v413
      %1015 = vst.msk [vmem:[%s291 + $0x90] sm:$0xff] %vm996, %v414
      %1016 = vst.msk [vmem:[%s291 + $0x98] sm:$0xff] %vm996, %v415
      %1017 = vst.msk [vmem:[%s291 + $0xa0] sm:$0xff] %vm996, %v416
      %1018 = vst.msk [vmem:[%s291 + $0xa8] sm:$0xff] %vm996, %v417
      %1019 = vst.msk [vmem:[%s291 + $0xb0] sm:$0xff] %vm996, %v418
      %1020 = vst.msk [vmem:[%s291 + $0xb8] sm:$0xff] %vm996, %v419
      %1021 = vst.msk [vmem:[%s297] sm:$0xff] %vm996, %v540
      %1022 = vst.msk [vmem:[%s297 + $0x8] sm:$0xff] %vm996, %v541
      %1023 = vst.msk [vmem:[%s297 + $0x10] sm:$0xff] %vm996, %v542
      %1024 = vst.msk [vmem:[%s297 + $0x18] sm:$0xff] %vm996, %v543
      %1025 = vst.msk [vmem:[%s297 + $0x20] sm:$0xff] %vm996, %v544
      %1026 = vst.msk [vmem:[%s297 + $0x28] sm:$0xff] %vm996, %v545
      %1027 = vst.msk [vmem:[%s297 + $0x30] sm:$0xff] %vm996, %v546
      %1028 = vst.msk [vmem:[%s297 + $0x38] sm:$0xff] %vm996, %v547
      %1029 = vst.msk [vmem:[%s297 + $0x40] sm:$0xff] %vm996, %v548
      %1030 = vst.msk [vmem:[%s297 + $0x48] sm:$0xff] %vm996, %v549
      %1031 = vst.msk [vmem:[%s297 + $0x50] sm:$0xff] %vm996, %v550
      %1032 = vst.msk [vmem:[%s297 + $0x58] sm:$0xff] %vm996, %v551
      %1033 = vst.msk [vmem:[%s297 + $0x60] sm:$0xff] %vm996, %v552
      %1034 = vst.msk [vmem:[%s297 + $0x68] sm:$0xff] %vm996, %v553
      %1035 = vst.msk [vmem:[%s297 + $0x70] sm:$0xff] %vm996, %v554
      %1036 = vst.msk [vmem:[%s297 + $0x78] sm:$0xff] %vm996, %v555
      %1037 = vst.msk [vmem:[%s297 + $0x80] sm:$0xff] %vm996, %v556
      %1038 = vst.msk [vmem:[%s297 + $0x88] sm:$0xff] %vm996, %v557
      %1039 = vst.msk [vmem:[%s297 + $0x90] sm:$0xff] %vm996, %v558
      %1040 = vst.msk [vmem:[%s297 + $0x98] sm:$0xff] %vm996, %v559
      %1041 = vst.msk [vmem:[%s297 + $0xa0] sm:$0xff] %vm996, %v560
      %1042 = vst.msk [vmem:[%s297 + $0xa8] sm:$0xff] %vm996, %v561
      %1043 = vst.msk [vmem:[%s297 + $0xb0] sm:$0xff] %vm996, %v562
      %1044 = vst.msk [vmem:[%s297 + $0xb8] sm:$0xff] %vm996, %v563
      %s1045 = scalar_lea.vmem %s267, 192
      %v1046 = vld [vmem:[%s1045] sm:$0xff]
      %v1047 = vld [vmem:[%s1045 + $0x8] sm:$0xff]
      %v1048 = vld [vmem:[%s1045 + $0x10] sm:$0xff]
      %v1049 = vld [vmem:[%s1045 + $0x18] sm:$0xff]
      %v1050 = vld [vmem:[%s1045 + $0x20] sm:$0xff]
      %v1051 = vld [vmem:[%s1045 + $0x28] sm:$0xff]
      %v1052 = vld [vmem:[%s1045 + $0x30] sm:$0xff]
      %v1053 = vld [vmem:[%s1045 + $0x38] sm:$0xff]
      %v1054 = vld [vmem:[%s1045 + $0x40] sm:$0xff]
      %v1055 = vld [vmem:[%s1045 + $0x48] sm:$0xff]
      %v1056 = vld [vmem:[%s1045 + $0x50] sm:$0xff]
      %v1057 = vld [vmem:[%s1045 + $0x58] sm:$0xff]
      %v1058 = vld [vmem:[%s1045 + $0x60] sm:$0xff]
      %v1059 = vld [vmem:[%s1045 + $0x68] sm:$0xff]
      %v1060 = vld [vmem:[%s1045 + $0x70] sm:$0xff]
      %v1061 = vld [vmem:[%s1045 + $0x78] sm:$0xff]
      %v1062 = vld [vmem:[%s1045 + $0x80] sm:$0xff]
      %v1063 = vld [vmem:[%s1045 + $0x88] sm:$0xff]
      %v1064 = vld [vmem:[%s1045 + $0x90] sm:$0xff]
      %v1065 = vld [vmem:[%s1045 + $0x98] sm:$0xff]
      %v1066 = vld [vmem:[%s1045 + $0xa0] sm:$0xff]
      %v1067 = vld [vmem:[%s1045 + $0xa8] sm:$0xff]
      %v1068 = vld [vmem:[%s1045 + $0xb0] sm:$0xff]
      %v1069 = vld [vmem:[%s1045 + $0xb8] sm:$0xff]
      %v1070 = vsel %vm323, %v1046, 0.0
      %1071 = vadd.xlane.f32.xlu0 %v1070
      %v1072 = vpop.xlane.xlu0 %1071
      %v1073 = vsel %vm323, %v1047, 0.0
      %1074 = vadd.xlane.f32.xlu0 %v1073
      %v1075 = vpop.xlane.xlu0 %1074
      %v1076 = vsel %vm323, %v1048, 0.0
      %1077 = vadd.xlane.f32.xlu0 %v1076
      %v1078 = vpop.xlane.xlu0 %1077
      %v1079 = vsel %vm323, %v1049, 0.0
      %1080 = vadd.xlane.f32.xlu0 %v1079
      %v1081 = vpop.xlane.xlu0 %1080
      %v1082 = vsel %vm323, %v1050, 0.0
      %1083 = vadd.xlane.f32.xlu0 %v1082
      %v1084 = vpop.xlane.xlu0 %1083
      %v1085 = vsel %vm323, %v1051, 0.0
      %1086 = vadd.xlane.f32.xlu0 %v1085
      %v1087 = vpop.xlane.xlu0 %1086
      %v1088 = vsel %vm323, %v1052, 0.0
      %1089 = vadd.xlane.f32.xlu0 %v1088
      %v1090 = vpop.xlane.xlu0 %1089
      %v1091 = vsel %vm323, %v1053, 0.0
      %1092 = vadd.xlane.f32.xlu0 %v1091
      %v1093 = vpop.xlane.xlu0 %1092
      %v1094 = vsel %vm323, %v1054, 0.0
      %1095 = vadd.xlane.f32.xlu0 %v1094
      %v1096 = vpop.xlane.xlu0 %1095
      %v1097 = vsel %vm323, %v1055, 0.0
      %1098 = vadd.xlane.f32.xlu0 %v1097
      %v1099 = vpop.xlane.xlu0 %1098
      %v1100 = vsel %vm323, %v1056, 0.0
      %1101 = vadd.xlane.f32.xlu0 %v1100
      %v1102 = vpop.xlane.xlu0 %1101
      %v1103 = vsel %vm323, %v1057, 0.0
      %1104 = vadd.xlane.f32.xlu0 %v1103
      %v1105 = vpop.xlane.xlu0 %1104
      %v1106 = vsel %vm323, %v1058, 0.0
      %1107 = vadd.xlane.f32.xlu0 %v1106
      %v1108 = vpop.xlane.xlu0 %1107
      %v1109 = vsel %vm323, %v1059, 0.0
      %1110 = vadd.xlane.f32.xlu0 %v1109
      %v1111 = vpop.xlane.xlu0 %1110
      %v1112 = vsel %vm323, %v1060, 0.0
      %1113 = vadd.xlane.f32.xlu0 %v1112
      %v1114 = vpop.xlane.xlu0 %1113
      %v1115 = vsel %vm323, %v1061, 0.0
      %1116 = vadd.xlane.f32.xlu0 %v1115
      %v1117 = vpop.xlane.xlu0 %1116
      %v1118 = vsel %vm323, %v1062, 0.0
      %1119 = vadd.xlane.f32.xlu0 %v1118
      %v1120 = vpop.xlane.xlu0 %1119
      %v1121 = vsel %vm323, %v1063, 0.0
      %1122 = vadd.xlane.f32.xlu0 %v1121
      %v1123 = vpop.xlane.xlu0 %1122
      %v1124 = vsel %vm323, %v1064, 0.0
      %1125 = vadd.xlane.f32.xlu0 %v1124
      %v1126 = vpop.xlane.xlu0 %1125
      %v1127 = vsel %vm323, %v1065, 0.0
      %1128 = vadd.xlane.f32.xlu0 %v1127
      %v1129 = vpop.xlane.xlu0 %1128
      %v1130 = vsel %vm323, %v1066, 0.0
      %1131 = vadd.xlane.f32.xlu0 %v1130
      %v1132 = vpop.xlane.xlu0 %1131
      %v1133 = vsel %vm323, %v1067, 0.0
      %1134 = vadd.xlane.f32.xlu0 %v1133
      %v1135 = vpop.xlane.xlu0 %1134
      %v1136 = vsel %vm323, %v1068, 0.0
      %1137 = vadd.xlane.f32.xlu0 %v1136
      %v1138 = vpop.xlane.xlu0 %1137
      %v1139 = vsel %vm323, %v1069, 0.0
      %1140 = vadd.xlane.f32.xlu0 %v1139
      %v1141 = vpop.xlane.xlu0 %1140
      %v1142 = vmul.f32 %v1072, 0.020408163
      %v1143 = vmul.f32 %v1075, 0.020408163
      %v1144 = vmul.f32 %v1078, 0.020408163
      %v1145 = vmul.f32 %v1081, 0.020408163
      %v1146 = vmul.f32 %v1084, 0.020408163
      %v1147 = vmul.f32 %v1087, 0.020408163
      %v1148 = vmul.f32 %v1090, 0.020408163
      %v1149 = vmul.f32 %v1093, 0.020408163
      %v1150 = vmul.f32 %v1096, 0.020408163
      %v1151 = vmul.f32 %v1099, 0.020408163
      %v1152 = vmul.f32 %v1102, 0.020408163
      %v1153 = vmul.f32 %v1105, 0.020408163
      %v1154 = vmul.f32 %v1108, 0.020408163
      %v1155 = vmul.f32 %v1111, 0.020408163
      %v1156 = vmul.f32 %v1114, 0.020408163
      %v1157 = vmul.f32 %v1117, 0.020408163
      %v1158 = vmul.f32 %v1120, 0.020408163
      %v1159 = vmul.f32 %v1123, 0.020408163
      %v1160 = vmul.f32 %v1126, 0.020408163
      %v1161 = vmul.f32 %v1129, 0.020408163
      %v1162 = vmul.f32 %v1132, 0.020408163
      %v1163 = vmul.f32 %v1135, 0.020408163
      %v1164 = vmul.f32 %v1138, 0.020408163
      %v1165 = vmul.f32 %v1141, 0.020408163
      %v1166 = vsub.f32 %v1046, %v1142
      %v1167 = vsub.f32 %v1047, %v1143
      %v1168 = vsub.f32 %v1048, %v1144
      %v1169 = vsub.f32 %v1049, %v1145
      %v1170 = vsub.f32 %v1050, %v1146
      %v1171 = vsub.f32 %v1051, %v1147
      %v1172 = vsub.f32 %v1052, %v1148
      %v1173 = vsub.f32 %v1053, %v1149
      %v1174 = vsub.f32 %v1054, %v1150
      %v1175 = vsub.f32 %v1055, %v1151
      %v1176 = vsub.f32 %v1056, %v1152
      %v1177 = vsub.f32 %v1057, %v1153
      %v1178 = vsub.f32 %v1058, %v1154
      %v1179 = vsub.f32 %v1059, %v1155
      %v1180 = vsub.f32 %v1060, %v1156
      %v1181 = vsub.f32 %v1061, %v1157
      %v1182 = vsub.f32 %v1062, %v1158
      %v1183 = vsub.f32 %v1063, %v1159
      %v1184 = vsub.f32 %v1064, %v1160
      %v1185 = vsub.f32 %v1065, %v1161
      %v1186 = vsub.f32 %v1066, %v1162
      %v1187 = vsub.f32 %v1067, %v1163
      %v1188 = vsub.f32 %v1068, %v1164
      %v1189 = vsub.f32 %v1069, %v1165
      %v1190 = vmul.f32 %v1166, %v1166
      %v1191 = vmul.f32 %v1167, %v1167
      %v1192 = vmul.f32 %v1168, %v1168
      %v1193 = vmul.f32 %v1169, %v1169
      %v1194 = vmul.f32 %v1170, %v1170
      %v1195 = vmul.f32 %v1171, %v1171
      %v1196 = vmul.f32 %v1172, %v1172
      %v1197 = vmul.f32 %v1173, %v1173
      %v1198 = vmul.f32 %v1174, %v1174
      %v1199 = vmul.f32 %v1175, %v1175
      %v1200 = vmul.f32 %v1176, %v1176
      %v1201 = vmul.f32 %v1177, %v1177
      %v1202 = vmul.f32 %v1178, %v1178
      %v1203 = vmul.f32 %v1179, %v1179
      %v1204 = vmul.f32 %v1180, %v1180
      %v1205 = vmul.f32 %v1181, %v1181
      %v1206 = vmul.f32 %v1182, %v1182
      %v1207 = vmul.f32 %v1183, %v1183
      %v1208 = vmul.f32 %v1184, %v1184
      %v1209 = vmul.f32 %v1185, %v1185
      %v1210 = vmul.f32 %v1186, %v1186
      %v1211 = vmul.f32 %v1187, %v1187
      %v1212 = vmul.f32 %v1188, %v1188
      %v1213 = vmul.f32 %v1189, %v1189
      %v1214 = vsel %vm323, %v1190, 0.0
      %1215 = vadd.xlane.f32.xlu0 %v1214
      %v1216 = vpop.xlane.xlu0 %1215
      %v1217 = vsel %vm323, %v1191, 0.0
      %1218 = vadd.xlane.f32.xlu0 %v1217
      %v1219 = vpop.xlane.xlu0 %1218
      %v1220 = vsel %vm323, %v1192, 0.0
      %1221 = vadd.xlane.f32.xlu0 %v1220
      %v1222 = vpop.xlane.xlu0 %1221
      %v1223 = vsel %vm323, %v1193, 0.0
      %1224 = vadd.xlane.f32.xlu0 %v1223
      %v1225 = vpop.xlane.xlu0 %1224
      %v1226 = vsel %vm323, %v1194, 0.0
      %1227 = vadd.xlane.f32.xlu0 %v1226
      %v1228 = vpop.xlane.xlu0 %1227
      %v1229 = vsel %vm323, %v1195, 0.0
      %1230 = vadd.xlane.f32.xlu0 %v1229
      %v1231 = vpop.xlane.xlu0 %1230
      %v1232 = vsel %vm323, %v1196, 0.0
      %1233 = vadd.xlane.f32.xlu0 %v1232
      %v1234 = vpop.xlane.xlu0 %1233
      %v1235 = vsel %vm323, %v1197, 0.0
      %1236 = vadd.xlane.f32.xlu0 %v1235
      %v1237 = vpop.xlane.xlu0 %1236
      %v1238 = vsel %vm323, %v1198, 0.0
      %1239 = vadd.xlane.f32.xlu0 %v1238
      %v1240 = vpop.xlane.xlu0 %1239
      %v1241 = vsel %vm323, %v1199, 0.0
      %1242 = vadd.xlane.f32.xlu0 %v1241
      %v1243 = vpop.xlane.xlu0 %1242
      %v1244 = vsel %vm323, %v1200, 0.0
      %1245 = vadd.xlane.f32.xlu0 %v1244
      %v1246 = vpop.xlane.xlu0 %1245
      %v1247 = vsel %vm323, %v1201, 0.0
      %1248 = vadd.xlane.f32.xlu0 %v1247
      %v1249 = vpop.xlane.xlu0 %1248
      %v1250 = vsel %vm323, %v1202, 0.0
      %1251 = vadd.xlane.f32.xlu0 %v1250
      %v1252 = vpop.xlane.xlu0 %1251
      %v1253 = vsel %vm323, %v1203, 0.0
      %1254 = vadd.xlane.f32.xlu0 %v1253
      %v1255 = vpop.xlane.xlu0 %1254
      %v1256 = vsel %vm323, %v1204, 0.0
      %1257 = vadd.xlane.f32.xlu0 %v1256
      %v1258 = vpop.xlane.xlu0 %1257
      %v1259 = vsel %vm323, %v1205, 0.0
      %1260 = vadd.xlane.f32.xlu0 %v1259
      %v1261 = vpop.xlane.xlu0 %1260
      %v1262 = vsel %vm323, %v1206, 0.0
      %1263 = vadd.xlane.f32.xlu0 %v1262
      %v1264 = vpop.xlane.xlu0 %1263
      %v1265 = vsel %vm323, %v1207, 0.0
      %1266 = vadd.xlane.f32.xlu0 %v1265
      %v1267 = vpop.xlane.xlu0 %1266
      %v1268 = vsel %vm323, %v1208, 0.0
      %1269 = vadd.xlane.f32.xlu0 %v1268
      %v1270 = vpop.xlane.xlu0 %1269
      %v1271 = vsel %vm323, %v1209, 0.0
      %1272 = vadd.xlane.f32.xlu0 %v1271
      %v1273 = vpop.xlane.xlu0 %1272
      %v1274 = vsel %vm323, %v1210, 0.0
      %1275 = vadd.xlane.f32.xlu0 %v1274
      %v1276 = vpop.xlane.xlu0 %1275
      %v1277 = vsel %vm323, %v1211, 0.0
      %1278 = vadd.xlane.f32.xlu0 %v1277
      %v1279 = vpop.xlane.xlu0 %1278
      %v1280 = vsel %vm323, %v1212, 0.0
      %1281 = vadd.xlane.f32.xlu0 %v1280
      %v1282 = vpop.xlane.xlu0 %1281
      %v1283 = vsel %vm323, %v1213, 0.0
      %1284 = vadd.xlane.f32.xlu0 %v1283
      %v1285 = vpop.xlane.xlu0 %1284
      %v1286 = vmul.f32 %v1216, 0.020408163
      %v1287 = vmul.f32 %v1219, 0.020408163
      %v1288 = vmul.f32 %v1222, 0.020408163
      %v1289 = vmul.f32 %v1225, 0.020408163
      %v1290 = vmul.f32 %v1228, 0.020408163
      %v1291 = vmul.f32 %v1231, 0.020408163
      %v1292 = vmul.f32 %v1234, 0.020408163
      %v1293 = vmul.f32 %v1237, 0.020408163
      %v1294 = vmul.f32 %v1240, 0.020408163
      %v1295 = vmul.f32 %v1243, 0.020408163
      %v1296 = vmul.f32 %v1246, 0.020408163
      %v1297 = vmul.f32 %v1249, 0.020408163
      %v1298 = vmul.f32 %v1252, 0.020408163
      %v1299 = vmul.f32 %v1255, 0.020408163
      %v1300 = vmul.f32 %v1258, 0.020408163
      %v1301 = vmul.f32 %v1261, 0.020408163
      %v1302 = vmul.f32 %v1264, 0.020408163
      %v1303 = vmul.f32 %v1267, 0.020408163
      %v1304 = vmul.f32 %v1270, 0.020408163
      %v1305 = vmul.f32 %v1273, 0.020408163
      %v1306 = vmul.f32 %v1276, 0.020408163
      %v1307 = vmul.f32 %v1279, 0.020408163
      %v1308 = vmul.f32 %v1282, 0.020408163
      %v1309 = vmul.f32 %v1285, 0.020408163
      %v1310 = vadd.f32 %v1286, 1e-05
      %v1311 = vadd.f32 %v1287, 1e-05
      %v1312 = vadd.f32 %v1288, 1e-05
      %v1313 = vadd.f32 %v1289, 1e-05
      %v1314 = vadd.f32 %v1290, 1e-05
      %v1315 = vadd.f32 %v1291, 1e-05
      %v1316 = vadd.f32 %v1292, 1e-05
      %v1317 = vadd.f32 %v1293, 1e-05
      %v1318 = vadd.f32 %v1294, 1e-05
      %v1319 = vadd.f32 %v1295, 1e-05
      %v1320 = vadd.f32 %v1296, 1e-05
      %v1321 = vadd.f32 %v1297, 1e-05
      %v1322 = vadd.f32 %v1298, 1e-05
      %v1323 = vadd.f32 %v1299, 1e-05
      %v1324 = vadd.f32 %v1300, 1e-05
      %v1325 = vadd.f32 %v1301, 1e-05
      %v1326 = vadd.f32 %v1302, 1e-05
      %v1327 = vadd.f32 %v1303, 1e-05
      %v1328 = vadd.f32 %v1304, 1e-05
      %v1329 = vadd.f32 %v1305, 1e-05
      %v1330 = vadd.f32 %v1306, 1e-05
      %v1331 = vadd.f32 %v1307, 1e-05
      %v1332 = vadd.f32 %v1308, 1e-05
      %v1333 = vadd.f32 %v1309, 1e-05
      %v1334 = vrsqrt.pop %v1310
      %v1335 = vrsqrt.pop %v1311
      %v1336 = vrsqrt.pop %v1312
      %v1337 = vrsqrt.pop %v1313
      %v1338 = vrsqrt.pop %v1314
      %v1339 = vrsqrt.pop %v1315
      %v1340 = vrsqrt.pop %v1316
      %v1341 = vrsqrt.pop %v1317
      %v1342 = vrsqrt.pop %v1318
      %v1343 = vrsqrt.pop %v1319
      %v1344 = vrsqrt.pop %v1320
      %v1345 = vrsqrt.pop %v1321
      %v1346 = vrsqrt.pop %v1322
      %v1347 = vrsqrt.pop %v1323
      %v1348 = vrsqrt.pop %v1324
      %v1349 = vrsqrt.pop %v1325
      %v1350 = vrsqrt.pop %v1326
      %v1351 = vrsqrt.pop %v1327
      %v1352 = vrsqrt.pop %v1328
      %v1353 = vrsqrt.pop %v1329
      %v1354 = vrsqrt.pop %v1330
      %v1355 = vrsqrt.pop %v1331
      %v1356 = vrsqrt.pop %v1332
      %v1357 = vrsqrt.pop %v1333
      %s1358 = scalar_lea.vmem %s273, 192
      %v1359 = vld [vmem:[%s1358] sm:$0xff]
      %v1360 = vld [vmem:[%s1358 + $0x8] sm:$0xff]
      %v1361 = vld [vmem:[%s1358 + $0x10] sm:$0xff]
      %v1362 = vld [vmem:[%s1358 + $0x18] sm:$0xff]
      %v1363 = vld [vmem:[%s1358 + $0x20] sm:$0xff]
      %v1364 = vld [vmem:[%s1358 + $0x28] sm:$0xff]
      %v1365 = vld [vmem:[%s1358 + $0x30] sm:$0xff]
      %v1366 = vld [vmem:[%s1358 + $0x38] sm:$0xff]
      %v1367 = vld [vmem:[%s1358 + $0x40] sm:$0xff]
      %v1368 = vld [vmem:[%s1358 + $0x48] sm:$0xff]
      %v1369 = vld [vmem:[%s1358 + $0x50] sm:$0xff]
      %v1370 = vld [vmem:[%s1358 + $0x58] sm:$0xff]
      %v1371 = vld [vmem:[%s1358 + $0x60] sm:$0xff]
      %v1372 = vld [vmem:[%s1358 + $0x68] sm:$0xff]
      %v1373 = vld [vmem:[%s1358 + $0x70] sm:$0xff]
      %v1374 = vld [vmem:[%s1358 + $0x78] sm:$0xff]
      %v1375 = vld [vmem:[%s1358 + $0x80] sm:$0xff]
      %v1376 = vld [vmem:[%s1358 + $0x88] sm:$0xff]
      %v1377 = vld [vmem:[%s1358 + $0x90] sm:$0xff]
      %v1378 = vld [vmem:[%s1358 + $0x98] sm:$0xff]
      %v1379 = vld [vmem:[%s1358 + $0xa0] sm:$0xff]
      %v1380 = vld [vmem:[%s1358 + $0xa8] sm:$0xff]
      %v1381 = vld [vmem:[%s1358 + $0xb0] sm:$0xff]
      %v1382 = vld [vmem:[%s1358 + $0xb8] sm:$0xff]
      %v1383 = vmul.f32 %v1334, %v1359
      %v1384 = vmul.f32 %v1335, %v1360
      %v1385 = vmul.f32 %v1336, %v1361
      %v1386 = vmul.f32 %v1337, %v1362
      %v1387 = vmul.f32 %v1338, %v1363
      %v1388 = vmul.f32 %v1339, %v1364
      %v1389 = vmul.f32 %v1340, %v1365
      %v1390 = vmul.f32 %v1341, %v1366
      %v1391 = vmul.f32 %v1342, %v1367
      %v1392 = vmul.f32 %v1343, %v1368
      %v1393 = vmul.f32 %v1344, %v1369
      %v1394 = vmul.f32 %v1345, %v1370
      %v1395 = vmul.f32 %v1346, %v1371
      %v1396 = vmul.f32 %v1347, %v1372
      %v1397 = vmul.f32 %v1348, %v1373
      %v1398 = vmul.f32 %v1349, %v1374
      %v1399 = vmul.f32 %v1350, %v1375
      %v1400 = vmul.f32 %v1351, %v1376
      %v1401 = vmul.f32 %v1352, %v1377
      %v1402 = vmul.f32 %v1353, %v1378
      %v1403 = vmul.f32 %v1354, %v1379
      %v1404 = vmul.f32 %v1355, %v1380
      %v1405 = vmul.f32 %v1356, %v1381
      %v1406 = vmul.f32 %v1357, %v1382
      %1408 = vset.pattern.permute.xlu0 0
      %1409 = vperm.xlu0 %1408, %v1383
      %v1410 = vpop.permute.xlu0 %1409
      %1413 = vset.pattern.permute.xlu0 0
      %1414 = vperm.xlu0 %1413, %v1384
      %v1415 = vpop.permute.xlu0 %1414
      %1418 = vset.pattern.permute.xlu0 0
      %1419 = vperm.xlu0 %1418, %v1385
      %v1420 = vpop.permute.xlu0 %1419
      %1423 = vset.pattern.permute.xlu0 0
      %1424 = vperm.xlu0 %1423, %v1386
      %v1425 = vpop.permute.xlu0 %1424
      %1428 = vset.pattern.permute.xlu0 0
      %1429 = vperm.xlu0 %1428, %v1387
      %v1430 = vpop.permute.xlu0 %1429
      %1433 = vset.pattern.permute.xlu0 0
      %1434 = vperm.xlu0 %1433, %v1388
      %v1435 = vpop.permute.xlu0 %1434
      %1438 = vset.pattern.permute.xlu0 0
      %1439 = vperm.xlu0 %1438, %v1389
      %v1440 = vpop.permute.xlu0 %1439
      %1443 = vset.pattern.permute.xlu0 0
      %1444 = vperm.xlu0 %1443, %v1390
      %v1445 = vpop.permute.xlu0 %1444
      %1448 = vset.pattern.permute.xlu0 0
      %1449 = vperm.xlu0 %1448, %v1391
      %v1450 = vpop.permute.xlu0 %1449
      %1453 = vset.pattern.permute.xlu0 0
      %1454 = vperm.xlu0 %1453, %v1392
      %v1455 = vpop.permute.xlu0 %1454
      %1458 = vset.pattern.permute.xlu0 0
      %1459 = vperm.xlu0 %1458, %v1393
      %v1460 = vpop.permute.xlu0 %1459
      %1463 = vset.pattern.permute.xlu0 0
      %1464 = vperm.xlu0 %1463, %v1394
      %v1465 = vpop.permute.xlu0 %1464
      %1468 = vset.pattern.permute.xlu0 0
      %1469 = vperm.xlu0 %1468, %v1395
      %v1470 = vpop.permute.xlu0 %1469
      %1473 = vset.pattern.permute.xlu0 0
      %1474 = vperm.xlu0 %1473, %v1396
      %v1475 = vpop.permute.xlu0 %1474
      %1478 = vset.pattern.permute.xlu0 0
      %1479 = vperm.xlu0 %1478, %v1397
      %v1480 = vpop.permute.xlu0 %1479
      %1483 = vset.pattern.permute.xlu0 0
      %1484 = vperm.xlu0 %1483, %v1398
      %v1485 = vpop.permute.xlu0 %1484
      %1488 = vset.pattern.permute.xlu0 0
      %1489 = vperm.xlu0 %1488, %v1399
      %v1490 = vpop.permute.xlu0 %1489
      %1493 = vset.pattern.permute.xlu0 0
      %1494 = vperm.xlu0 %1493, %v1400
      %v1495 = vpop.permute.xlu0 %1494
      %1498 = vset.pattern.permute.xlu0 0
      %1499 = vperm.xlu0 %1498, %v1401
      %v1500 = vpop.permute.xlu0 %1499
      %1503 = vset.pattern.permute.xlu0 0
      %1504 = vperm.xlu0 %1503, %v1402
      %v1505 = vpop.permute.xlu0 %1504
      %1508 = vset.pattern.permute.xlu0 0
      %1509 = vperm.xlu0 %1508, %v1403
      %v1510 = vpop.permute.xlu0 %1509
      %1513 = vset.pattern.permute.xlu0 0
      %1514 = vperm.xlu0 %1513, %v1404
      %v1515 = vpop.permute.xlu0 %1514
      %1518 = vset.pattern.permute.xlu0 0
      %1519 = vperm.xlu0 %1518, %v1405
      %v1520 = vpop.permute.xlu0 %1519
      %1523 = vset.pattern.permute.xlu0 0
      %1524 = vperm.xlu0 %1523, %v1406
      %v1525 = vpop.permute.xlu0 %1524
      %v1527 = vmul.f32 %v1166, %v1410
      %v1528 = vmul.f32 %v1167, %v1415
      %v1529 = vmul.f32 %v1168, %v1420
      %v1530 = vmul.f32 %v1169, %v1425
      %v1531 = vmul.f32 %v1170, %v1430
      %v1532 = vmul.f32 %v1171, %v1435
      %v1533 = vmul.f32 %v1172, %v1440
      %v1534 = vmul.f32 %v1173, %v1445
      %v1535 = vmul.f32 %v1174, %v1450
      %v1536 = vmul.f32 %v1175, %v1455
      %v1537 = vmul.f32 %v1176, %v1460
      %v1538 = vmul.f32 %v1177, %v1465
      %v1539 = vmul.f32 %v1178, %v1470
      %v1540 = vmul.f32 %v1179, %v1475
      %v1541 = vmul.f32 %v1180, %v1480
      %v1542 = vmul.f32 %v1181, %v1485
      %v1543 = vmul.f32 %v1182, %v1490
      %v1544 = vmul.f32 %v1183, %v1495
      %v1545 = vmul.f32 %v1184, %v1500
      %v1546 = vmul.f32 %v1185, %v1505
      %v1547 = vmul.f32 %v1186, %v1510
      %v1548 = vmul.f32 %v1187, %v1515
      %v1549 = vmul.f32 %v1188, %v1520
      %v1550 = vmul.f32 %v1189, %v1525
      %s1551 = scalar_lea.vmem %s279, 192
      %v1552 = vld [vmem:[%s1551] sm:$0xff]
      %v1553 = vld [vmem:[%s1551 + $0x8] sm:$0xff]
      %v1554 = vld [vmem:[%s1551 + $0x10] sm:$0xff]
      %v1555 = vld [vmem:[%s1551 + $0x18] sm:$0xff]
      %v1556 = vld [vmem:[%s1551 + $0x20] sm:$0xff]
      %v1557 = vld [vmem:[%s1551 + $0x28] sm:$0xff]
      %v1558 = vld [vmem:[%s1551 + $0x30] sm:$0xff]
      %v1559 = vld [vmem:[%s1551 + $0x38] sm:$0xff]
      %v1560 = vld [vmem:[%s1551 + $0x40] sm:$0xff]
      %v1561 = vld [vmem:[%s1551 + $0x48] sm:$0xff]
      %v1562 = vld [vmem:[%s1551 + $0x50] sm:$0xff]
      %v1563 = vld [vmem:[%s1551 + $0x58] sm:$0xff]
      %v1564 = vld [vmem:[%s1551 + $0x60] sm:$0xff]
      %v1565 = vld [vmem:[%s1551 + $0x68] sm:$0xff]
      %v1566 = vld [vmem:[%s1551 + $0x70] sm:$0xff]
      %v1567 = vld [vmem:[%s1551 + $0x78] sm:$0xff]
      %v1568 = vld [vmem:[%s1551 + $0x80] sm:$0xff]
      %v1569 = vld [vmem:[%s1551 + $0x88] sm:$0xff]
      %v1570 = vld [vmem:[%s1551 + $0x90] sm:$0xff]
      %v1571 = vld [vmem:[%s1551 + $0x98] sm:$0xff]
      %v1572 = vld [vmem:[%s1551 + $0xa0] sm:$0xff]
      %v1573 = vld [vmem:[%s1551 + $0xa8] sm:$0xff]
      %v1574 = vld [vmem:[%s1551 + $0xb0] sm:$0xff]
      %v1575 = vld [vmem:[%s1551 + $0xb8] sm:$0xff]
      %1577 = vset.pattern.permute.xlu0 0
      %1578 = vperm.xlu0 %1577, %v1552
      %v1579 = vpop.permute.xlu0 %1578
      %1582 = vset.pattern.permute.xlu0 0
      %1583 = vperm.xlu0 %1582, %v1553
      %v1584 = vpop.permute.xlu0 %1583
      %1587 = vset.pattern.permute.xlu0 0
      %1588 = vperm.xlu0 %1587, %v1554
      %v1589 = vpop.permute.xlu0 %1588
      %1592 = vset.pattern.permute.xlu0 0
      %1593 = vperm.xlu0 %1592, %v1555
      %v1594 = vpop.permute.xlu0 %1593
      %1597 = vset.pattern.permute.xlu0 0
      %1598 = vperm.xlu0 %1597, %v1556
      %v1599 = vpop.permute.xlu0 %1598
      %1602 = vset.pattern.permute.xlu0 0
      %1603 = vperm.xlu0 %1602, %v1557
      %v1604 = vpop.permute.xlu0 %1603
      %1607 = vset.pattern.permute.xlu0 0
      %1608 = vperm.xlu0 %1607, %v1558
      %v1609 = vpop.permute.xlu0 %1608
      %1612 = vset.pattern.permute.xlu0 0
      %1613 = vperm.xlu0 %1612, %v1559
      %v1614 = vpop.permute.xlu0 %1613
      %1617 = vset.pattern.permute.xlu0 0
      %1618 = vperm.xlu0 %1617, %v1560
      %v1619 = vpop.permute.xlu0 %1618
      %1622 = vset.pattern.permute.xlu0 0
      %1623 = vperm.xlu0 %1622, %v1561
      %v1624 = vpop.permute.xlu0 %1623
      %1627 = vset.pattern.permute.xlu0 0
      %1628 = vperm.xlu0 %1627, %v1562
      %v1629 = vpop.permute.xlu0 %1628
      %1632 = vset.pattern.permute.xlu0 0
      %1633 = vperm.xlu0 %1632, %v1563
      %v1634 = vpop.permute.xlu0 %1633
      %1637 = vset.pattern.permute.xlu0 0
      %1638 = vperm.xlu0 %1637, %v1564
      %v1639 = vpop.permute.xlu0 %1638
      %1642 = vset.pattern.permute.xlu0 0
      %1643 = vperm.xlu0 %1642, %v1565
      %v1644 = vpop.permute.xlu0 %1643
      %1647 = vset.pattern.permute.xlu0 0
      %1648 = vperm.xlu0 %1647, %v1566
      %v1649 = vpop.permute.xlu0 %1648
      %1652 = vset.pattern.permute.xlu0 0
      %1653 = vperm.xlu0 %1652, %v1567
      %v1654 = vpop.permute.xlu0 %1653
      %1657 = vset.pattern.permute.xlu0 0
      %1658 = vperm.xlu0 %1657, %v1568
      %v1659 = vpop.permute.xlu0 %1658
      %1662 = vset.pattern.permute.xlu0 0
      %1663 = vperm.xlu0 %1662, %v1569
      %v1664 = vpop.permute.xlu0 %1663
      %1667 = vset.pattern.permute.xlu0 0
      %1668 = vperm.xlu0 %1667, %v1570
      %v1669 = vpop.permute.xlu0 %1668
      %1672 = vset.pattern.permute.xlu0 0
      %1673 = vperm.xlu0 %1672, %v1571
      %v1674 = vpop.permute.xlu0 %1673
      %1677 = vset.pattern.permute.xlu0 0
      %1678 = vperm.xlu0 %1677, %v1572
      %v1679 = vpop.permute.xlu0 %1678
      %1682 = vset.pattern.permute.xlu0 0
      %1683 = vperm.xlu0 %1682, %v1573
      %v1684 = vpop.permute.xlu0 %1683
      %1687 = vset.pattern.permute.xlu0 0
      %1688 = vperm.xlu0 %1687, %v1574
      %v1689 = vpop.permute.xlu0 %1688
      %1692 = vset.pattern.permute.xlu0 0
      %1693 = vperm.xlu0 %1692, %v1575
      %v1694 = vpop.permute.xlu0 %1693
      %v1696 = vadd.f32 %v1527, %v1579
      %v1697 = vadd.f32 %v1528, %v1584
      %v1698 = vadd.f32 %v1529, %v1589
      %v1699 = vadd.f32 %v1530, %v1594
      %v1700 = vadd.f32 %v1531, %v1599
      %v1701 = vadd.f32 %v1532, %v1604
      %v1702 = vadd.f32 %v1533, %v1609
      %v1703 = vadd.f32 %v1534, %v1614
      %v1704 = vadd.f32 %v1535, %v1619
      %v1705 = vadd.f32 %v1536, %v1624
      %v1706 = vadd.f32 %v1537, %v1629
      %v1707 = vadd.f32 %v1538, %v1634
      %v1708 = vadd.f32 %v1539, %v1639
      %v1709 = vadd.f32 %v1540, %v1644
      %v1710 = vadd.f32 %v1541, %v1649
      %v1711 = vadd.f32 %v1542, %v1654
      %v1712 = vadd.f32 %v1543, %v1659
      %v1713 = vadd.f32 %v1544, %v1664
      %v1714 = vadd.f32 %v1545, %v1669
      %v1715 = vadd.f32 %v1546, %v1674
      %v1716 = vadd.f32 %v1547, %v1679
      %v1717 = vadd.f32 %v1548, %v1684
      %v1718 = vadd.f32 %v1549, %v1689
      %v1719 = vadd.f32 %v1550, %v1694
      %s1720 = scalar_lea.vmem %s285, 192
      %1721 = vst.msk [vmem:[%s1720] sm:$0xff] %vm323, %v1696
      %1722 = vst.msk [vmem:[%s1720 + $0x8] sm:$0xff] %vm323, %v1697
      %1723 = vst.msk [vmem:[%s1720 + $0x10] sm:$0xff] %vm323, %v1698
      %1724 = vst.msk [vmem:[%s1720 + $0x18] sm:$0xff] %vm323, %v1699
      %1725 = vst.msk [vmem:[%s1720 + $0x20] sm:$0xff] %vm323, %v1700
      %1726 = vst.msk [vmem:[%s1720 + $0x28] sm:$0xff] %vm323, %v1701
      %1727 = vst.msk [vmem:[%s1720 + $0x30] sm:$0xff] %vm323, %v1702
      %1728 = vst.msk [vmem:[%s1720 + $0x38] sm:$0xff] %vm323, %v1703
      %1729 = vst.msk [vmem:[%s1720 + $0x40] sm:$0xff] %vm323, %v1704
      %1730 = vst.msk [vmem:[%s1720 + $0x48] sm:$0xff] %vm323, %v1705
      %1731 = vst.msk [vmem:[%s1720 + $0x50] sm:$0xff] %vm323, %v1706
      %1732 = vst.msk [vmem:[%s1720 + $0x58] sm:$0xff] %vm323, %v1707
      %1733 = vst.msk [vmem:[%s1720 + $0x60] sm:$0xff] %vm323, %v1708
      %1734 = vst.msk [vmem:[%s1720 + $0x68] sm:$0xff] %vm323, %v1709
      %1735 = vst.msk [vmem:[%s1720 + $0x70] sm:$0xff] %vm323, %v1710
      %1736 = vst.msk [vmem:[%s1720 + $0x78] sm:$0xff] %vm323, %v1711
      %1737 = vst.msk [vmem:[%s1720 + $0x80] sm:$0xff] %vm323, %v1712
      %1738 = vst.msk [vmem:[%s1720 + $0x88] sm:$0xff] %vm323, %v1713
      %1739 = vst.msk [vmem:[%s1720 + $0x90] sm:$0xff] %vm323, %v1714
      %1740 = vst.msk [vmem:[%s1720 + $0x98] sm:$0xff] %vm323, %v1715
      %1741 = vst.msk [vmem:[%s1720 + $0xa0] sm:$0xff] %vm323, %v1716
      %1742 = vst.msk [vmem:[%s1720 + $0xa8] sm:$0xff] %vm323, %v1717
      %1743 = vst.msk [vmem:[%s1720 + $0xb0] sm:$0xff] %vm323, %v1718
      %1744 = vst.msk [vmem:[%s1720 + $0xb8] sm:$0xff] %vm323, %v1719
      %s1745 = scalar_lea.vmem %s291, 192
      %1746 = vst.msk [vmem:[%s1745] sm:$0xff] %vm996, %v1142
      %1747 = vst.msk [vmem:[%s1745 + $0x8] sm:$0xff] %vm996, %v1143
      %1748 = vst.msk [vmem:[%s1745 + $0x10] sm:$0xff] %vm996, %v1144
      %1749 = vst.msk [vmem:[%s1745 + $0x18] sm:$0xff] %vm996, %v1145
      %1750 = vst.msk [vmem:[%s1745 + $0x20] sm:$0xff] %vm996, %v1146
      %1751 = vst.msk [vmem:[%s1745 + $0x28] sm:$0xff] %vm996, %v1147
      %1752 = vst.msk [vmem:[%s1745 + $0x30] sm:$0xff] %vm996, %v1148
      %1753 = vst.msk [vmem:[%s1745 + $0x38] sm:$0xff] %vm996, %v1149
      %1754 = vst.msk [vmem:[%s1745 + $0x40] sm:$0xff] %vm996, %v1150
      %1755 = vst.msk [vmem:[%s1745 + $0x48] sm:$0xff] %vm996, %v1151
      %1756 = vst.msk [vmem:[%s1745 + $0x50] sm:$0xff] %vm996, %v1152
      %1757 = vst.msk [vmem:[%s1745 + $0x58] sm:$0xff] %vm996, %v1153
      %1758 = vst.msk [vmem:[%s1745 + $0x60] sm:$0xff] %vm996, %v1154
      %1759 = vst.msk [vmem:[%s1745 + $0x68] sm:$0xff] %vm996, %v1155
      %1760 = vst.msk [vmem:[%s1745 + $0x70] sm:$0xff] %vm996, %v1156
      %1761 = vst.msk [vmem:[%s1745 + $0x78] sm:$0xff] %vm996, %v1157
      %1762 = vst.msk [vmem:[%s1745 + $0x80] sm:$0xff] %vm996, %v1158
      %1763 = vst.msk [vmem:[%s1745 + $0x88] sm:$0xff] %vm996, %v1159
      %1764 = vst.msk [vmem:[%s1745 + $0x90] sm:$0xff] %vm996, %v1160
      %1765 = vst.msk [vmem:[%s1745 + $0x98] sm:$0xff] %vm996, %v1161
      %1766 = vst.msk [vmem:[%s1745 + $0xa0] sm:$0xff] %vm996, %v1162
      %1767 = vst.msk [vmem:[%s1745 + $0xa8] sm:$0xff] %vm996, %v1163
      %1768 = vst.msk [vmem:[%s1745 + $0xb0] sm:$0xff] %vm996, %v1164
      %1769 = vst.msk [vmem:[%s1745 + $0xb8] sm:$0xff] %vm996, %v1165
      %s1770 = scalar_lea.vmem %s297, 192
      %1771 = vst.msk [vmem:[%s1770] sm:$0xff] %vm996, %v1286
      %1772 = vst.msk [vmem:[%s1770 + $0x8] sm:$0xff] %vm996, %v1287
      %1773 = vst.msk [vmem:[%s1770 + $0x10] sm:$0xff] %vm996, %v1288
      %1774 = vst.msk [vmem:[%s1770 + $0x18] sm:$0xff] %vm996, %v1289
      %1775 = vst.msk [vmem:[%s1770 + $0x20] sm:$0xff] %vm996, %v1290
      %1776 = vst.msk [vmem:[%s1770 + $0x28] sm:$0xff] %vm996, %v1291
      %1777 = vst.msk [vmem:[%s1770 + $0x30] sm:$0xff] %vm996, %v1292
      %1778 = vst.msk [vmem:[%s1770 + $0x38] sm:$0xff] %vm996, %v1293
      %1779 = vst.msk [vmem:[%s1770 + $0x40] sm:$0xff] %vm996, %v1294
      %1780 = vst.msk [vmem:[%s1770 + $0x48] sm:$0xff] %vm996, %v1295
      %1781 = vst.msk [vmem:[%s1770 + $0x50] sm:$0xff] %vm996, %v1296
      %1782 = vst.msk [vmem:[%s1770 + $0x58] sm:$0xff] %vm996, %v1297
      %1783 = vst.msk [vmem:[%s1770 + $0x60] sm:$0xff] %vm996, %v1298
      %1784 = vst.msk [vmem:[%s1770 + $0x68] sm:$0xff] %vm996, %v1299
      %1785 = vst.msk [vmem:[%s1770 + $0x70] sm:$0xff] %vm996, %v1300
      %1786 = vst.msk [vmem:[%s1770 + $0x78] sm:$0xff] %vm996, %v1301
      %1787 = vst.msk [vmem:[%s1770 + $0x80] sm:$0xff] %vm996, %v1302
      %1788 = vst.msk [vmem:[%s1770 + $0x88] sm:$0xff] %vm996, %v1303
      %1789 = vst.msk [vmem:[%s1770 + $0x90] sm:$0xff] %vm996, %v1304
      %1790 = vst.msk [vmem:[%s1770 + $0x98] sm:$0xff] %vm996, %v1305
      %1791 = vst.msk [vmem:[%s1770 + $0xa0] sm:$0xff] %vm996, %v1306
      %1792 = vst.msk [vmem:[%s1770 + $0xa8] sm:$0xff] %vm996, %v1307
      %1793 = vst.msk [vmem:[%s1770 + $0xb0] sm:$0xff] %vm996, %v1308
      %1794 = vst.msk [vmem:[%s1770 + $0xb8] sm:$0xff] %vm996, %v1309
      %s1795 = scalar_lea.vmem %s267, 384
      %v1796 = vld [vmem:[%s1795] sm:$0xff]
      %v1797 = vld [vmem:[%s1795 + $0x8] sm:$0xff]
      %v1798 = vld [vmem:[%s1795 + $0x10] sm:$0xff]
      %v1799 = vld [vmem:[%s1795 + $0x18] sm:$0xff]
      %v1800 = vld [vmem:[%s1795 + $0x20] sm:$0xff]
      %v1801 = vld [vmem:[%s1795 + $0x28] sm:$0xff]
      %v1802 = vld [vmem:[%s1795 + $0x30] sm:$0xff]
      %v1803 = vld [vmem:[%s1795 + $0x38] sm:$0xff]
      %v1804 = vld [vmem:[%s1795 + $0x40] sm:$0xff]
      %v1805 = vld [vmem:[%s1795 + $0x48] sm:$0xff]
      %v1806 = vld [vmem:[%s1795 + $0x50] sm:$0xff]
      %v1807 = vld [vmem:[%s1795 + $0x58] sm:$0xff]
      %v1808 = vld [vmem:[%s1795 + $0x60] sm:$0xff]
      %v1809 = vld [vmem:[%s1795 + $0x68] sm:$0xff]
      %v1810 = vld [vmem:[%s1795 + $0x70] sm:$0xff]
      %v1811 = vld [vmem:[%s1795 + $0x78] sm:$0xff]
      %v1812 = vld [vmem:[%s1795 + $0x80] sm:$0xff]
      %v1813 = vld [vmem:[%s1795 + $0x88] sm:$0xff]
      %v1814 = vld [vmem:[%s1795 + $0x90] sm:$0xff]
      %v1815 = vld [vmem:[%s1795 + $0x98] sm:$0xff]
      %v1816 = vld [vmem:[%s1795 + $0xa0] sm:$0xff]
      %v1817 = vld [vmem:[%s1795 + $0xa8] sm:$0xff]
      %v1818 = vld [vmem:[%s1795 + $0xb0] sm:$0xff]
      %v1819 = vld [vmem:[%s1795 + $0xb8] sm:$0xff]
      %v1820 = vsel %vm323, %v1796, 0.0
      %1821 = vadd.xlane.f32.xlu0 %v1820
      %v1822 = vpop.xlane.xlu0 %1821
      %v1823 = vsel %vm323, %v1797, 0.0
      %1824 = vadd.xlane.f32.xlu0 %v1823
      %v1825 = vpop.xlane.xlu0 %1824
      %v1826 = vsel %vm323, %v1798, 0.0
      %1827 = vadd.xlane.f32.xlu0 %v1826
      %v1828 = vpop.xlane.xlu0 %1827
      %v1829 = vsel %vm323, %v1799, 0.0
      %1830 = vadd.xlane.f32.xlu0 %v1829
      %v1831 = vpop.xlane.xlu0 %1830
      %v1832 = vsel %vm323, %v1800, 0.0
      %1833 = vadd.xlane.f32.xlu0 %v1832
      %v1834 = vpop.xlane.xlu0 %1833
      %v1835 = vsel %vm323, %v1801, 0.0
      %1836 = vadd.xlane.f32.xlu0 %v1835
      %v1837 = vpop.xlane.xlu0 %1836
      %v1838 = vsel %vm323, %v1802, 0.0
      %1839 = vadd.xlane.f32.xlu0 %v1838
      %v1840 = vpop.xlane.xlu0 %1839
      %v1841 = vsel %vm323, %v1803, 0.0
      %1842 = vadd.xlane.f32.xlu0 %v1841
      %v1843 = vpop.xlane.xlu0 %1842
      %v1844 = vsel %vm323, %v1804, 0.0
      %1845 = vadd.xlane.f32.xlu0 %v1844
      %v1846 = vpop.xlane.xlu0 %1845
      %v1847 = vsel %vm323, %v1805, 0.0
      %1848 = vadd.xlane.f32.xlu0 %v1847
      %v1849 = vpop.xlane.xlu0 %1848
      %v1850 = vsel %vm323, %v1806, 0.0
      %1851 = vadd.xlane.f32.xlu0 %v1850
      %v1852 = vpop.xlane.xlu0 %1851
      %v1853 = vsel %vm323, %v1807, 0.0
      %1854 = vadd.xlane.f32.xlu0 %v1853
      %v1855 = vpop.xlane.xlu0 %1854
      %v1856 = vsel %vm323, %v1808, 0.0
      %1857 = vadd.xlane.f32.xlu0 %v1856
      %v1858 = vpop.xlane.xlu0 %1857
      %v1859 = vsel %vm323, %v1809, 0.0
      %1860 = vadd.xlane.f32.xlu0 %v1859
      %v1861 = vpop.xlane.xlu0 %1860
      %v1862 = vsel %vm323, %v1810, 0.0
      %1863 = vadd.xlane.f32.xlu0 %v1862
      %v1864 = vpop.xlane.xlu0 %1863
      %v1865 = vsel %vm323, %v1811, 0.0
      %1866 = vadd.xlane.f32.xlu0 %v1865
      %v1867 = vpop.xlane.xlu0 %1866
      %v1868 = vsel %vm323, %v1812, 0.0
      %1869 = vadd.xlane.f32.xlu0 %v1868
      %v1870 = vpop.xlane.xlu0 %1869
      %v1871 = vsel %vm323, %v1813, 0.0
      %1872 = vadd.xlane.f32.xlu0 %v1871
      %v1873 = vpop.xlane.xlu0 %1872
      %v1874 = vsel %vm323, %v1814, 0.0
      %1875 = vadd.xlane.f32.xlu0 %v1874
      %v1876 = vpop.xlane.xlu0 %1875
      %v1877 = vsel %vm323, %v1815, 0.0
      %1878 = vadd.xlane.f32.xlu0 %v1877
      %v1879 = vpop.xlane.xlu0 %1878
      %v1880 = vsel %vm323, %v1816, 0.0
      %1881 = vadd.xlane.f32.xlu0 %v1880
      %v1882 = vpop.xlane.xlu0 %1881
      %v1883 = vsel %vm323, %v1817, 0.0
      %1884 = vadd.xlane.f32.xlu0 %v1883
      %v1885 = vpop.xlane.xlu0 %1884
      %v1886 = vsel %vm323, %v1818, 0.0
      %1887 = vadd.xlane.f32.xlu0 %v1886
      %v1888 = vpop.xlane.xlu0 %1887
      %v1889 = vsel %vm323, %v1819, 0.0
      %1890 = vadd.xlane.f32.xlu0 %v1889
      %v1891 = vpop.xlane.xlu0 %1890
      %v1892 = vmul.f32 %v1822, 0.020408163
      %v1893 = vmul.f32 %v1825, 0.020408163
      %v1894 = vmul.f32 %v1828, 0.020408163
      %v1895 = vmul.f32 %v1831, 0.020408163
      %v1896 = vmul.f32 %v1834, 0.020408163
      %v1897 = vmul.f32 %v1837, 0.020408163
      %v1898 = vmul.f32 %v1840, 0.020408163
      %v1899 = vmul.f32 %v1843, 0.020408163
      %v1900 = vmul.f32 %v1846, 0.020408163
      %v1901 = vmul.f32 %v1849, 0.020408163
      %v1902 = vmul.f32 %v1852, 0.020408163
      %v1903 = vmul.f32 %v1855, 0.020408163
      %v1904 = vmul.f32 %v1858, 0.020408163
      %v1905 = vmul.f32 %v1861, 0.020408163
      %v1906 = vmul.f32 %v1864, 0.020408163
      %v1907 = vmul.f32 %v1867, 0.020408163
      %v1908 = vmul.f32 %v1870, 0.020408163
      %v1909 = vmul.f32 %v1873, 0.020408163
      %v1910 = vmul.f32 %v1876, 0.020408163
      %v1911 = vmul.f32 %v1879, 0.020408163
      %v1912 = vmul.f32 %v1882, 0.020408163
      %v1913 = vmul.f32 %v1885, 0.020408163
      %v1914 = vmul.f32 %v1888, 0.020408163
      %v1915 = vmul.f32 %v1891, 0.020408163
      %v1916 = vsub.f32 %v1796, %v1892
      %v1917 = vsub.f32 %v1797, %v1893
      %v1918 = vsub.f32 %v1798, %v1894
      %v1919 = vsub.f32 %v1799, %v1895
      %v1920 = vsub.f32 %v1800, %v1896
      %v1921 = vsub.f32 %v1801, %v1897
      %v1922 = vsub.f32 %v1802, %v1898
      %v1923 = vsub.f32 %v1803, %v1899
      %v1924 = vsub.f32 %v1804, %v1900
      %v1925 = vsub.f32 %v1805, %v1901
      %v1926 = vsub.f32 %v1806, %v1902
      %v1927 = vsub.f32 %v1807, %v1903
      %v1928 = vsub.f32 %v1808, %v1904
      %v1929 = vsub.f32 %v1809, %v1905
      %v1930 = vsub.f32 %v1810, %v1906
      %v1931 = vsub.f32 %v1811, %v1907
      %v1932 = vsub.f32 %v1812, %v1908
      %v1933 = vsub.f32 %v1813, %v1909
      %v1934 = vsub.f32 %v1814, %v1910
      %v1935 = vsub.f32 %v1815, %v1911
      %v1936 = vsub.f32 %v1816, %v1912
      %v1937 = vsub.f32 %v1817, %v1913
      %v1938 = vsub.f32 %v1818, %v1914
      %v1939 = vsub.f32 %v1819, %v1915
      %v1940 = vmul.f32 %v1916, %v1916
      %v1941 = vmul.f32 %v1917, %v1917
      %v1942 = vmul.f32 %v1918, %v1918
      %v1943 = vmul.f32 %v1919, %v1919
      %v1944 = vmul.f32 %v1920, %v1920
      %v1945 = vmul.f32 %v1921, %v1921
      %v1946 = vmul.f32 %v1922, %v1922
      %v1947 = vmul.f32 %v1923, %v1923
      %v1948 = vmul.f32 %v1924, %v1924
      %v1949 = vmul.f32 %v1925, %v1925
      %v1950 = vmul.f32 %v1926, %v1926
      %v1951 = vmul.f32 %v1927, %v1927
      %v1952 = vmul.f32 %v1928, %v1928
      %v1953 = vmul.f32 %v1929, %v1929
      %v1954 = vmul.f32 %v1930, %v1930
      %v1955 = vmul.f32 %v1931, %v1931
      %v1956 = vmul.f32 %v1932, %v1932
      %v1957 = vmul.f32 %v1933, %v1933
      %v1958 = vmul.f32 %v1934, %v1934
      %v1959 = vmul.f32 %v1935, %v1935
      %v1960 = vmul.f32 %v1936, %v1936
      %v1961 = vmul.f32 %v1937, %v1937
      %v1962 = vmul.f32 %v1938, %v1938
      %v1963 = vmul.f32 %v1939, %v1939
      %v1964 = vsel %vm323, %v1940, 0.0
      %1965 = vadd.xlane.f32.xlu0 %v1964
      %v1966 = vpop.xlane.xlu0 %1965
      %v1967 = vsel %vm323, %v1941, 0.0
      %1968 = vadd.xlane.f32.xlu0 %v1967
      %v1969 = vpop.xlane.xlu0 %1968
      %v1970 = vsel %vm323, %v1942, 0.0
      %1971 = vadd.xlane.f32.xlu0 %v1970
      %v1972 = vpop.xlane.xlu0 %1971
      %v1973 = vsel %vm323, %v1943, 0.0
      %1974 = vadd.xlane.f32.xlu0 %v1973
      %v1975 = vpop.xlane.xlu0 %1974
      %v1976 = vsel %vm323, %v1944, 0.0
      %1977 = vadd.xlane.f32.xlu0 %v1976
      %v1978 = vpop.xlane.xlu0 %1977
      %v1979 = vsel %vm323, %v1945, 0.0
      %1980 = vadd.xlane.f32.xlu0 %v1979
      %v1981 = vpop.xlane.xlu0 %1980
      %v1982 = vsel %vm323, %v1946, 0.0
      %1983 = vadd.xlane.f32.xlu0 %v1982
      %v1984 = vpop.xlane.xlu0 %1983
      %v1985 = vsel %vm323, %v1947, 0.0
      %1986 = vadd.xlane.f32.xlu0 %v1985
      %v1987 = vpop.xlane.xlu0 %1986
      %v1988 = vsel %vm323, %v1948, 0.0
      %1989 = vadd.xlane.f32.xlu0 %v1988
      %v1990 = vpop.xlane.xlu0 %1989
      %v1991 = vsel %vm323, %v1949, 0.0
      %1992 = vadd.xlane.f32.xlu0 %v1991
      %v1993 = vpop.xlane.xlu0 %1992
      %v1994 = vsel %vm323, %v1950, 0.0
      %1995 = vadd.xlane.f32.xlu0 %v1994
      %v1996 = vpop.xlane.xlu0 %1995
      %v1997 = vsel %vm323, %v1951, 0.0
      %1998 = vadd.xlane.f32.xlu0 %v1997
      %v1999 = vpop.xlane.xlu0 %1998
      %v2000 = vsel %vm323, %v1952, 0.0
      %2001 = vadd.xlane.f32.xlu0 %v2000
      %v2002 = vpop.xlane.xlu0 %2001
      %v2003 = vsel %vm323, %v1953, 0.0
      %2004 = vadd.xlane.f32.xlu0 %v2003
      %v2005 = vpop.xlane.xlu0 %2004
      %v2006 = vsel %vm323, %v1954, 0.0
      %2007 = vadd.xlane.f32.xlu0 %v2006
      %v2008 = vpop.xlane.xlu0 %2007
      %v2009 = vsel %vm323, %v1955, 0.0
      %2010 = vadd.xlane.f32.xlu0 %v2009
      %v2011 = vpop.xlane.xlu0 %2010
      %v2012 = vsel %vm323, %v1956, 0.0
      %2013 = vadd.xlane.f32.xlu0 %v2012
      %v2014 = vpop.xlane.xlu0 %2013
      %v2015 = vsel %vm323, %v1957, 0.0
      %2016 = vadd.xlane.f32.xlu0 %v2015
      %v2017 = vpop.xlane.xlu0 %2016
      %v2018 = vsel %vm323, %v1958, 0.0
      %2019 = vadd.xlane.f32.xlu0 %v2018
      %v2020 = vpop.xlane.xlu0 %2019
      %v2021 = vsel %vm323, %v1959, 0.0
      %2022 = vadd.xlane.f32.xlu0 %v2021
      %v2023 = vpop.xlane.xlu0 %2022
      %v2024 = vsel %vm323, %v1960, 0.0
      %2025 = vadd.xlane.f32.xlu0 %v2024
      %v2026 = vpop.xlane.xlu0 %2025
      %v2027 = vsel %vm323, %v1961, 0.0
      %2028 = vadd.xlane.f32.xlu0 %v2027
      %v2029 = vpop.xlane.xlu0 %2028
      %v2030 = vsel %vm323, %v1962, 0.0
      %2031 = vadd.xlane.f32.xlu0 %v2030
      %v2032 = vpop.xlane.xlu0 %2031
      %v2033 = vsel %vm323, %v1963, 0.0
      %2034 = vadd.xlane.f32.xlu0 %v2033
      %v2035 = vpop.xlane.xlu0 %2034
      %v2036 = vmul.f32 %v1966, 0.020408163
      %v2037 = vmul.f32 %v1969, 0.020408163
      %v2038 = vmul.f32 %v1972, 0.020408163
      %v2039 = vmul.f32 %v1975, 0.020408163
      %v2040 = vmul.f32 %v1978, 0.020408163
      %v2041 = vmul.f32 %v1981, 0.020408163
      %v2042 = vmul.f32 %v1984, 0.020408163
      %v2043 = vmul.f32 %v1987, 0.020408163
      %v2044 = vmul.f32 %v1990, 0.020408163
      %v2045 = vmul.f32 %v1993, 0.020408163
      %v2046 = vmul.f32 %v1996, 0.020408163
      %v2047 = vmul.f32 %v1999, 0.020408163
      %v2048 = vmul.f32 %v2002, 0.020408163
      %v2049 = vmul.f32 %v2005, 0.020408163
      %v2050 = vmul.f32 %v2008, 0.020408163
      %v2051 = vmul.f32 %v2011, 0.020408163
      %v2052 = vmul.f32 %v2014, 0.020408163
      %v2053 = vmul.f32 %v2017, 0.020408163
      %v2054 = vmul.f32 %v2020, 0.020408163
      %v2055 = vmul.f32 %v2023, 0.020408163
      %v2056 = vmul.f32 %v2026, 0.020408163
      %v2057 = vmul.f32 %v2029, 0.020408163
      %v2058 = vmul.f32 %v2032, 0.020408163
      %v2059 = vmul.f32 %v2035, 0.020408163
      %v2060 = vadd.f32 %v2036, 1e-05
      %v2061 = vadd.f32 %v2037, 1e-05
      %v2062 = vadd.f32 %v2038, 1e-05
      %v2063 = vadd.f32 %v2039, 1e-05
      %v2064 = vadd.f32 %v2040, 1e-05
      %v2065 = vadd.f32 %v2041, 1e-05
      %v2066 = vadd.f32 %v2042, 1e-05
      %v2067 = vadd.f32 %v2043, 1e-05
      %v2068 = vadd.f32 %v2044, 1e-05
      %v2069 = vadd.f32 %v2045, 1e-05
      %v2070 = vadd.f32 %v2046, 1e-05
      %v2071 = vadd.f32 %v2047, 1e-05
      %v2072 = vadd.f32 %v2048, 1e-05
      %v2073 = vadd.f32 %v2049, 1e-05
      %v2074 = vadd.f32 %v2050, 1e-05
      %v2075 = vadd.f32 %v2051, 1e-05
      %v2076 = vadd.f32 %v2052, 1e-05
      %v2077 = vadd.f32 %v2053, 1e-05
      %v2078 = vadd.f32 %v2054, 1e-05
      %v2079 = vadd.f32 %v2055, 1e-05
      %v2080 = vadd.f32 %v2056, 1e-05
      %v2081 = vadd.f32 %v2057, 1e-05
      %v2082 = vadd.f32 %v2058, 1e-05
      %v2083 = vadd.f32 %v2059, 1e-05
      %v2084 = vrsqrt.pop %v2060
      %v2085 = vrsqrt.pop %v2061
      %v2086 = vrsqrt.pop %v2062
      %v2087 = vrsqrt.pop %v2063
      %v2088 = vrsqrt.pop %v2064
      %v2089 = vrsqrt.pop %v2065
      %v2090 = vrsqrt.pop %v2066
      %v2091 = vrsqrt.pop %v2067
      %v2092 = vrsqrt.pop %v2068
      %v2093 = vrsqrt.pop %v2069
      %v2094 = vrsqrt.pop %v2070
      %v2095 = vrsqrt.pop %v2071
      %v2096 = vrsqrt.pop %v2072
      %v2097 = vrsqrt.pop %v2073
      %v2098 = vrsqrt.pop %v2074
      %v2099 = vrsqrt.pop %v2075
      %v2100 = vrsqrt.pop %v2076
      %v2101 = vrsqrt.pop %v2077
      %v2102 = vrsqrt.pop %v2078
      %v2103 = vrsqrt.pop %v2079
      %v2104 = vrsqrt.pop %v2080
      %v2105 = vrsqrt.pop %v2081
      %v2106 = vrsqrt.pop %v2082
      %v2107 = vrsqrt.pop %v2083
      %s2108 = scalar_lea.vmem %s273, 384
      %v2109 = vld [vmem:[%s2108] sm:$0xff]
      %v2110 = vld [vmem:[%s2108 + $0x8] sm:$0xff]
      %v2111 = vld [vmem:[%s2108 + $0x10] sm:$0xff]
      %v2112 = vld [vmem:[%s2108 + $0x18] sm:$0xff]
      %v2113 = vld [vmem:[%s2108 + $0x20] sm:$0xff]
      %v2114 = vld [vmem:[%s2108 + $0x28] sm:$0xff]
      %v2115 = vld [vmem:[%s2108 + $0x30] sm:$0xff]
      %v2116 = vld [vmem:[%s2108 + $0x38] sm:$0xff]
      %v2117 = vld [vmem:[%s2108 + $0x40] sm:$0xff]
      %v2118 = vld [vmem:[%s2108 + $0x48] sm:$0xff]
      %v2119 = vld [vmem:[%s2108 + $0x50] sm:$0xff]
      %v2120 = vld [vmem:[%s2108 + $0x58] sm:$0xff]
      %v2121 = vld [vmem:[%s2108 + $0x60] sm:$0xff]
      %v2122 = vld [vmem:[%s2108 + $0x68] sm:$0xff]
      %v2123 = vld [vmem:[%s2108 + $0x70] sm:$0xff]
      %v2124 = vld [vmem:[%s2108 + $0x78] sm:$0xff]
      %v2125 = vld [vmem:[%s2108 + $0x80] sm:$0xff]
      %v2126 = vld [vmem:[%s2108 + $0x88] sm:$0xff]
      %v2127 = vld [vmem:[%s2108 + $0x90] sm:$0xff]
      %v2128 = vld [vmem:[%s2108 + $0x98] sm:$0xff]
      %v2129 = vld [vmem:[%s2108 + $0xa0] sm:$0xff]
      %v2130 = vld [vmem:[%s2108 + $0xa8] sm:$0xff]
      %v2131 = vld [vmem:[%s2108 + $0xb0] sm:$0xff]
      %v2132 = vld [vmem:[%s2108 + $0xb8] sm:$0xff]
      %v2133 = vmul.f32 %v2084, %v2109
      %v2134 = vmul.f32 %v2085, %v2110
      %v2135 = vmul.f32 %v2086, %v2111
      %v2136 = vmul.f32 %v2087, %v2112
      %v2137 = vmul.f32 %v2088, %v2113
      %v2138 = vmul.f32 %v2089, %v2114
      %v2139 = vmul.f32 %v2090, %v2115
      %v2140 = vmul.f32 %v2091, %v2116
      %v2141 = vmul.f32 %v2092, %v2117
      %v2142 = vmul.f32 %v2093, %v2118
      %v2143 = vmul.f32 %v2094, %v2119
      %v2144 = vmul.f32 %v2095, %v2120
      %v2145 = vmul.f32 %v2096, %v2121
      %v2146 = vmul.f32 %v2097, %v2122
      %v2147 = vmul.f32 %v2098, %v2123
      %v2148 = vmul.f32 %v2099, %v2124
      %v2149 = vmul.f32 %v2100, %v2125
      %v2150 = vmul.f32 %v2101, %v2126
      %v2151 = vmul.f32 %v2102, %v2127
      %v2152 = vmul.f32 %v2103, %v2128
      %v2153 = vmul.f32 %v2104, %v2129
      %v2154 = vmul.f32 %v2105, %v2130
      %v2155 = vmul.f32 %v2106, %v2131
      %v2156 = vmul.f32 %v2107, %v2132
      %2158 = vset.pattern.permute.xlu0 0
      %2159 = vperm.xlu0 %2158, %v2133
      %v2160 = vpop.permute.xlu0 %2159
      %2163 = vset.pattern.permute.xlu0 0
      %2164 = vperm.xlu0 %2163, %v2134
      %v2165 = vpop.permute.xlu0 %2164
      %2168 = vset.pattern.permute.xlu0 0
      %2169 = vperm.xlu0 %2168, %v2135
      %v2170 = vpop.permute.xlu0 %2169
      %2173 = vset.pattern.permute.xlu0 0
      %2174 = vperm.xlu0 %2173, %v2136
      %v2175 = vpop.permute.xlu0 %2174
      %2178 = vset.pattern.permute.xlu0 0
      %2179 = vperm.xlu0 %2178, %v2137
      %v2180 = vpop.permute.xlu0 %2179
      %2183 = vset.pattern.permute.xlu0 0
      %2184 = vperm.xlu0 %2183, %v2138
      %v2185 = vpop.permute.xlu0 %2184
      %2188 = vset.pattern.permute.xlu0 0
      %2189 = vperm.xlu0 %2188, %v2139
      %v2190 = vpop.permute.xlu0 %2189
      %2193 = vset.pattern.permute.xlu0 0
      %2194 = vperm.xlu0 %2193, %v2140
      %v2195 = vpop.permute.xlu0 %2194
      %2198 = vset.pattern.permute.xlu0 0
      %2199 = vperm.xlu0 %2198, %v2141
      %v2200 = vpop.permute.xlu0 %2199
      %2203 = vset.pattern.permute.xlu0 0
      %2204 = vperm.xlu0 %2203, %v2142
      %v2205 = vpop.permute.xlu0 %2204
      %2208 = vset.pattern.permute.xlu0 0
      %2209 = vperm.xlu0 %2208, %v2143
      %v2210 = vpop.permute.xlu0 %2209
      %2213 = vset.pattern.permute.xlu0 0
      %2214 = vperm.xlu0 %2213, %v2144
      %v2215 = vpop.permute.xlu0 %2214
      %2218 = vset.pattern.permute.xlu0 0
      %2219 = vperm.xlu0 %2218, %v2145
      %v2220 = vpop.permute.xlu0 %2219
      %2223 = vset.pattern.permute.xlu0 0
      %2224 = vperm.xlu0 %2223, %v2146
      %v2225 = vpop.permute.xlu0 %2224
      %2228 = vset.pattern.permute.xlu0 0
      %2229 = vperm.xlu0 %2228, %v2147
      %v2230 = vpop.permute.xlu0 %2229
      %2233 = vset.pattern.permute.xlu0 0
      %2234 = vperm.xlu0 %2233, %v2148
      %v2235 = vpop.permute.xlu0 %2234
      %2238 = vset.pattern.permute.xlu0 0
      %2239 = vperm.xlu0 %2238, %v2149
      %v2240 = vpop.permute.xlu0 %2239
      %2243 = vset.pattern.permute.xlu0 0
      %2244 = vperm.xlu0 %2243, %v2150
      %v2245 = vpop.permute.xlu0 %2244
      %2248 = vset.pattern.permute.xlu0 0
      %2249 = vperm.xlu0 %2248, %v2151
      %v2250 = vpop.permute.xlu0 %2249
      %2253 = vset.pattern.permute.xlu0 0
      %2254 = vperm.xlu0 %2253, %v2152
      %v2255 = vpop.permute.xlu0 %2254
      %2258 = vset.pattern.permute.xlu0 0
      %2259 = vperm.xlu0 %2258, %v2153
      %v2260 = vpop.permute.xlu0 %2259
      %2263 = vset.pattern.permute.xlu0 0
      %2264 = vperm.xlu0 %2263, %v2154
      %v2265 = vpop.permute.xlu0 %2264
      %2268 = vset.pattern.permute.xlu0 0
      %2269 = vperm.xlu0 %2268, %v2155
      %v2270 = vpop.permute.xlu0 %2269
      %2273 = vset.pattern.permute.xlu0 0
      %2274 = vperm.xlu0 %2273, %v2156
      %v2275 = vpop.permute.xlu0 %2274
      %v2277 = vmul.f32 %v1916, %v2160
      %v2278 = vmul.f32 %v1917, %v2165
      %v2279 = vmul.f32 %v1918, %v2170
      %v2280 = vmul.f32 %v1919, %v2175
      %v2281 = vmul.f32 %v1920, %v2180
      %v2282 = vmul.f32 %v1921, %v2185
      %v2283 = vmul.f32 %v1922, %v2190
      %v2284 = vmul.f32 %v1923, %v2195
      %v2285 = vmul.f32 %v1924, %v2200
      %v2286 = vmul.f32 %v1925, %v2205
      %v2287 = vmul.f32 %v1926, %v2210
      %v2288 = vmul.f32 %v1927, %v2215
      %v2289 = vmul.f32 %v1928, %v2220
      %v2290 = vmul.f32 %v1929, %v2225
      %v2291 = vmul.f32 %v1930, %v2230
      %v2292 = vmul.f32 %v1931, %v2235
      %v2293 = vmul.f32 %v1932, %v2240
      %v2294 = vmul.f32 %v1933, %v2245
      %v2295 = vmul.f32 %v1934, %v2250
      %v2296 = vmul.f32 %v1935, %v2255
      %v2297 = vmul.f32 %v1936, %v2260
      %v2298 = vmul.f32 %v1937, %v2265
      %v2299 = vmul.f32 %v1938, %v2270
      %v2300 = vmul.f32 %v1939, %v2275
      %s2301 = scalar_lea.vmem %s279, 384
      %v2302 = vld [vmem:[%s2301] sm:$0xff]
      %v2303 = vld [vmem:[%s2301 + $0x8] sm:$0xff]
      %v2304 = vld [vmem:[%s2301 + $0x10] sm:$0xff]
      %v2305 = vld [vmem:[%s2301 + $0x18] sm:$0xff]
      %v2306 = vld [vmem:[%s2301 + $0x20] sm:$0xff]
      %v2307 = vld [vmem:[%s2301 + $0x28] sm:$0xff]
      %v2308 = vld [vmem:[%s2301 + $0x30] sm:$0xff]
      %v2309 = vld [vmem:[%s2301 + $0x38] sm:$0xff]
      %v2310 = vld [vmem:[%s2301 + $0x40] sm:$0xff]
      %v2311 = vld [vmem:[%s2301 + $0x48] sm:$0xff]
      %v2312 = vld [vmem:[%s2301 + $0x50] sm:$0xff]
      %v2313 = vld [vmem:[%s2301 + $0x58] sm:$0xff]
      %v2314 = vld [vmem:[%s2301 + $0x60] sm:$0xff]
      %v2315 = vld [vmem:[%s2301 + $0x68] sm:$0xff]
      %v2316 = vld [vmem:[%s2301 + $0x70] sm:$0xff]
      %v2317 = vld [vmem:[%s2301 + $0x78] sm:$0xff]
      %v2318 = vld [vmem:[%s2301 + $0x80] sm:$0xff]
      %v2319 = vld [vmem:[%s2301 + $0x88] sm:$0xff]
      %v2320 = vld [vmem:[%s2301 + $0x90] sm:$0xff]
      %v2321 = vld [vmem:[%s2301 + $0x98] sm:$0xff]
      %v2322 = vld [vmem:[%s2301 + $0xa0] sm:$0xff]
      %v2323 = vld [vmem:[%s2301 + $0xa8] sm:$0xff]
      %v2324 = vld [vmem:[%s2301 + $0xb0] sm:$0xff]
      %v2325 = vld [vmem:[%s2301 + $0xb8] sm:$0xff]
      %2327 = vset.pattern.permute.xlu0 0
      %2328 = vperm.xlu0 %2327, %v2302
      %v2329 = vpop.permute.xlu0 %2328
      %2332 = vset.pattern.permute.xlu0 0
      %2333 = vperm.xlu0 %2332, %v2303
      %v2334 = vpop.permute.xlu0 %2333
      %2337 = vset.pattern.permute.xlu0 0
      %2338 = vperm.xlu0 %2337, %v2304
      %v2339 = vpop.permute.xlu0 %2338
      %2342 = vset.pattern.permute.xlu0 0
      %2343 = vperm.xlu0 %2342, %v2305
      %v2344 = vpop.permute.xlu0 %2343
      %2347 = vset.pattern.permute.xlu0 0
      %2348 = vperm.xlu0 %2347, %v2306
      %v2349 = vpop.permute.xlu0 %2348
      %2352 = vset.pattern.permute.xlu0 0
      %2353 = vperm.xlu0 %2352, %v2307
      %v2354 = vpop.permute.xlu0 %2353
      %2357 = vset.pattern.permute.xlu0 0
      %2358 = vperm.xlu0 %2357, %v2308
      %v2359 = vpop.permute.xlu0 %2358
      %2362 = vset.pattern.permute.xlu0 0
      %2363 = vperm.xlu0 %2362, %v2309
      %v2364 = vpop.permute.xlu0 %2363
      %2367 = vset.pattern.permute.xlu0 0
      %2368 = vperm.xlu0 %2367, %v2310
      %v2369 = vpop.permute.xlu0 %2368
      %2372 = vset.pattern.permute.xlu0 0
      %2373 = vperm.xlu0 %2372, %v2311
      %v2374 = vpop.permute.xlu0 %2373
      %2377 = vset.pattern.permute.xlu0 0
      %2378 = vperm.xlu0 %2377, %v2312
      %v2379 = vpop.permute.xlu0 %2378
      %2382 = vset.pattern.permute.xlu0 0
      %2383 = vperm.xlu0 %2382, %v2313
      %v2384 = vpop.permute.xlu0 %2383
      %2387 = vset.pattern.permute.xlu0 0
      %2388 = vperm.xlu0 %2387, %v2314
      %v2389 = vpop.permute.xlu0 %2388
      %2392 = vset.pattern.permute.xlu0 0
      %2393 = vperm.xlu0 %2392, %v2315
      %v2394 = vpop.permute.xlu0 %2393
      %2397 = vset.pattern.permute.xlu0 0
      %2398 = vperm.xlu0 %2397, %v2316
      %v2399 = vpop.permute.xlu0 %2398
      %2402 = vset.pattern.permute.xlu0 0
      %2403 = vperm.xlu0 %2402, %v2317
      %v2404 = vpop.permute.xlu0 %2403
      %2407 = vset.pattern.permute.xlu0 0
      %2408 = vperm.xlu0 %2407, %v2318
      %v2409 = vpop.permute.xlu0 %2408
      %2412 = vset.pattern.permute.xlu0 0
      %2413 = vperm.xlu0 %2412, %v2319
      %v2414 = vpop.permute.xlu0 %2413
      %2417 = vset.pattern.permute.xlu0 0
      %2418 = vperm.xlu0 %2417, %v2320
      %v2419 = vpop.permute.xlu0 %2418
      %2422 = vset.pattern.permute.xlu0 0
      %2423 = vperm.xlu0 %2422, %v2321
      %v2424 = vpop.permute.xlu0 %2423
      %2427 = vset.pattern.permute.xlu0 0
      %2428 = vperm.xlu0 %2427, %v2322
      %v2429 = vpop.permute.xlu0 %2428
      %2432 = vset.pattern.permute.xlu0 0
      %2433 = vperm.xlu0 %2432, %v2323
      %v2434 = vpop.permute.xlu0 %2433
      %2437 = vset.pattern.permute.xlu0 0
      %2438 = vperm.xlu0 %2437, %v2324
      %v2439 = vpop.permute.xlu0 %2438
      %2442 = vset.pattern.permute.xlu0 0
      %2443 = vperm.xlu0 %2442, %v2325
      %v2444 = vpop.permute.xlu0 %2443
      %v2446 = vadd.f32 %v2277, %v2329
      %v2447 = vadd.f32 %v2278, %v2334
      %v2448 = vadd.f32 %v2279, %v2339
      %v2449 = vadd.f32 %v2280, %v2344
      %v2450 = vadd.f32 %v2281, %v2349
      %v2451 = vadd.f32 %v2282, %v2354
      %v2452 = vadd.f32 %v2283, %v2359
      %v2453 = vadd.f32 %v2284, %v2364
      %v2454 = vadd.f32 %v2285, %v2369
      %v2455 = vadd.f32 %v2286, %v2374
      %v2456 = vadd.f32 %v2287, %v2379
      %v2457 = vadd.f32 %v2288, %v2384
      %v2458 = vadd.f32 %v2289, %v2389
      %v2459 = vadd.f32 %v2290, %v2394
      %v2460 = vadd.f32 %v2291, %v2399
      %v2461 = vadd.f32 %v2292, %v2404
      %v2462 = vadd.f32 %v2293, %v2409
      %v2463 = vadd.f32 %v2294, %v2414
      %v2464 = vadd.f32 %v2295, %v2419
      %v2465 = vadd.f32 %v2296, %v2424
      %v2466 = vadd.f32 %v2297, %v2429
      %v2467 = vadd.f32 %v2298, %v2434
      %v2468 = vadd.f32 %v2299, %v2439
      %v2469 = vadd.f32 %v2300, %v2444
      %s2470 = scalar_lea.vmem %s285, 384
      %2471 = vst.msk [vmem:[%s2470] sm:$0xff] %vm323, %v2446
      %2472 = vst.msk [vmem:[%s2470 + $0x8] sm:$0xff] %vm323, %v2447
      %2473 = vst.msk [vmem:[%s2470 + $0x10] sm:$0xff] %vm323, %v2448
      %2474 = vst.msk [vmem:[%s2470 + $0x18] sm:$0xff] %vm323, %v2449
      %2475 = vst.msk [vmem:[%s2470 + $0x20] sm:$0xff] %vm323, %v2450
      %2476 = vst.msk [vmem:[%s2470 + $0x28] sm:$0xff] %vm323, %v2451
      %2477 = vst.msk [vmem:[%s2470 + $0x30] sm:$0xff] %vm323, %v2452
      %2478 = vst.msk [vmem:[%s2470 + $0x38] sm:$0xff] %vm323, %v2453
      %2479 = vst.msk [vmem:[%s2470 + $0x40] sm:$0xff] %vm323, %v2454
      %2480 = vst.msk [vmem:[%s2470 + $0x48] sm:$0xff] %vm323, %v2455
      %2481 = vst.msk [vmem:[%s2470 + $0x50] sm:$0xff] %vm323, %v2456
      %2482 = vst.msk [vmem:[%s2470 + $0x58] sm:$0xff] %vm323, %v2457
      %2483 = vst.msk [vmem:[%s2470 + $0x60] sm:$0xff] %vm323, %v2458
      %2484 = vst.msk [vmem:[%s2470 + $0x68] sm:$0xff] %vm323, %v2459
      %2485 = vst.msk [vmem:[%s2470 + $0x70] sm:$0xff] %vm323, %v2460
      %2486 = vst.msk [vmem:[%s2470 + $0x78] sm:$0xff] %vm323, %v2461
      %2487 = vst.msk [vmem:[%s2470 + $0x80] sm:$0xff] %vm323, %v2462
      %2488 = vst.msk [vmem:[%s2470 + $0x88] sm:$0xff] %vm323, %v2463
      %2489 = vst.msk [vmem:[%s2470 + $0x90] sm:$0xff] %vm323, %v2464
      %2490 = vst.msk [vmem:[%s2470 + $0x98] sm:$0xff] %vm323, %v2465
      %2491 = vst.msk [vmem:[%s2470 + $0xa0] sm:$0xff] %vm323, %v2466
      %2492 = vst.msk [vmem:[%s2470 + $0xa8] sm:$0xff] %vm323, %v2467
      %2493 = vst.msk [vmem:[%s2470 + $0xb0] sm:$0xff] %vm323, %v2468
      %2494 = vst.msk [vmem:[%s2470 + $0xb8] sm:$0xff] %vm323, %v2469
      %s2495 = scalar_lea.vmem %s291, 384
      %2496 = vst.msk [vmem:[%s2495] sm:$0xff] %vm996, %v1892
      %2497 = vst.msk [vmem:[%s2495 + $0x8] sm:$0xff] %vm996, %v1893
      %2498 = vst.msk [vmem:[%s2495 + $0x10] sm:$0xff] %vm996, %v1894
      %2499 = vst.msk [vmem:[%s2495 + $0x18] sm:$0xff] %vm996, %v1895
      %2500 = vst.msk [vmem:[%s2495 + $0x20] sm:$0xff] %vm996, %v1896
      %2501 = vst.msk [vmem:[%s2495 + $0x28] sm:$0xff] %vm996, %v1897
      %2502 = vst.msk [vmem:[%s2495 + $0x30] sm:$0xff] %vm996, %v1898
      %2503 = vst.msk [vmem:[%s2495 + $0x38] sm:$0xff] %vm996, %v1899
      %2504 = vst.msk [vmem:[%s2495 + $0x40] sm:$0xff] %vm996, %v1900
      %2505 = vst.msk [vmem:[%s2495 + $0x48] sm:$0xff] %vm996, %v1901
      %2506 = vst.msk [vmem:[%s2495 + $0x50] sm:$0xff] %vm996, %v1902
      %2507 = vst.msk [vmem:[%s2495 + $0x58] sm:$0xff] %vm996, %v1903
      %2508 = vst.msk [vmem:[%s2495 + $0x60] sm:$0xff] %vm996, %v1904
      %2509 = vst.msk [vmem:[%s2495 + $0x68] sm:$0xff] %vm996, %v1905
      %2510 = vst.msk [vmem:[%s2495 + $0x70] sm:$0xff] %vm996, %v1906
      %2511 = vst.msk [vmem:[%s2495 + $0x78] sm:$0xff] %vm996, %v1907
      %2512 = vst.msk [vmem:[%s2495 + $0x80] sm:$0xff] %vm996, %v1908
      %2513 = vst.msk [vmem:[%s2495 + $0x88] sm:$0xff] %vm996, %v1909
      %2514 = vst.msk [vmem:[%s2495 + $0x90] sm:$0xff] %vm996, %v1910
      %2515 = vst.msk [vmem:[%s2495 + $0x98] sm:$0xff] %vm996, %v1911
      %2516 = vst.msk [vmem:[%s2495 + $0xa0] sm:$0xff] %vm996, %v1912
      %2517 = vst.msk [vmem:[%s2495 + $0xa8] sm:$0xff] %vm996, %v1913
      %2518 = vst.msk [vmem:[%s2495 + $0xb0] sm:$0xff] %vm996, %v1914
      %2519 = vst.msk [vmem:[%s2495 + $0xb8] sm:$0xff] %vm996, %v1915
      %s2520 = scalar_lea.vmem %s297, 384
      %2521 = vst.msk [vmem:[%s2520] sm:$0xff] %vm996, %v2036
      %2522 = vst.msk [vmem:[%s2520 + $0x8] sm:$0xff] %vm996, %v2037
      %2523 = vst.msk [vmem:[%s2520 + $0x10] sm:$0xff] %vm996, %v2038
      %2524 = vst.msk [vmem:[%s2520 + $0x18] sm:$0xff] %vm996, %v2039
      %2525 = vst.msk [vmem:[%s2520 + $0x20] sm:$0xff] %vm996, %v2040
      %2526 = vst.msk [vmem:[%s2520 + $0x28] sm:$0xff] %vm996, %v2041
      %2527 = vst.msk [vmem:[%s2520 + $0x30] sm:$0xff] %vm996, %v2042
      %2528 = vst.msk [vmem:[%s2520 + $0x38] sm:$0xff] %vm996, %v2043
      %2529 = vst.msk [vmem:[%s2520 + $0x40] sm:$0xff] %vm996, %v2044
      %2530 = vst.msk [vmem:[%s2520 + $0x48] sm:$0xff] %vm996, %v2045
      %2531 = vst.msk [vmem:[%s2520 + $0x50] sm:$0xff] %vm996, %v2046
      %2532 = vst.msk [vmem:[%s2520 + $0x58] sm:$0xff] %vm996, %v2047
      %2533 = vst.msk [vmem:[%s2520 + $0x60] sm:$0xff] %vm996, %v2048
      %2534 = vst.msk [vmem:[%s2520 + $0x68] sm:$0xff] %vm996, %v2049
      %2535 = vst.msk [vmem:[%s2520 + $0x70] sm:$0xff] %vm996, %v2050
      %2536 = vst.msk [vmem:[%s2520 + $0x78] sm:$0xff] %vm996, %v2051
      %2537 = vst.msk [vmem:[%s2520 + $0x80] sm:$0xff] %vm996, %v2052
      %2538 = vst.msk [vmem:[%s2520 + $0x88] sm:$0xff] %vm996, %v2053
      %2539 = vst.msk [vmem:[%s2520 + $0x90] sm:$0xff] %vm996, %v2054
      %2540 = vst.msk [vmem:[%s2520 + $0x98] sm:$0xff] %vm996, %v2055
      %2541 = vst.msk [vmem:[%s2520 + $0xa0] sm:$0xff] %vm996, %v2056
      %2542 = vst.msk [vmem:[%s2520 + $0xa8] sm:$0xff] %vm996, %v2057
      %2543 = vst.msk [vmem:[%s2520 + $0xb0] sm:$0xff] %vm996, %v2058
      %2544 = vst.msk [vmem:[%s2520 + $0xb8] sm:$0xff] %vm996, %v2059
      %s2545 = smul.u32 72, %s17
      %p2546 = scmp.lt.s32.totalorder %s2545, 287
      %s2547 = scalar_select %p2546, %s2545, 287
      %s2548 = smul.addr %s2547, 8
      %s2549 = scalar_lea.vmem %s3, %s2548
      %s2550 = smul.u32 72, %s17
      %p2551 = scmp.lt.s32.totalorder %s2550, 287
      %s2552 = scalar_select %p2551, %s2550, 287
      %s2553 = smul.addr %s2552, 8
      %s2554 = scalar_lea.vmem %s4, %s2553
      %s2555 = smul.u32 72, %s17
      %p2556 = scmp.lt.s32.totalorder %s2555, 287
      %s2557 = scalar_select %p2556, %s2555, 287
      %s2558 = smul.addr %s2557, 8
      %s2559 = scalar_lea.vmem %s5, %s2558
      // Predicated region
      $region33: #{tpu_custom_call.1} parent=31 // pred_check
        %p2560 = pneg %p113
      $region34: #{tpu_custom_call.1} parent=31 // pred_check_branch
        %2562 = sbr.rel (%p2560) target = $region36
      $region35: #{tpu_custom_call.1} parent=31 // pred_region
        %s2563 = smul.u32 72, %s17
      $region36: #{tpu_custom_call.1} parent=31 // pred_fallthru
        _
      // Predicated region
      $region37: #{tpu_custom_call.1} parent=31 // pred_check
        %p2564 = pneg %p139
      $region38: #{tpu_custom_call.1} parent=31 // pred_check_branch
        %2566 = sbr.rel (%p2564) target = $region40
      $region39: #{tpu_custom_call.1} parent=31 // pred_region
        %s2567 = smul.u32 72, %s17
      $region40: #{tpu_custom_call.1} parent=31 // pred_fallthru
        _
      // Predicated region
      $region41: #{tpu_custom_call.1} parent=31 // pred_check
        %p2568 = pneg %p165
      $region42: #{tpu_custom_call.1} parent=31 // pred_check_branch
        %2570 = sbr.rel (%p2568) target = $region44
      $region43: #{tpu_custom_call.1} parent=31 // pred_region
        %s2571 = smul.u32 72, %s17
      $region44: #{tpu_custom_call.1} parent=31 // pred_fallthru
        _
    $region32: #{tpu_custom_call.1} parent=5 // pred_fallthru
      _
    %p2572 = scmp.le.s32.totalorder 2, %s12
    // Predicated region
    $region45: #{tpu_custom_call.1} parent=5 // pred_check
      %p2573 = pneg %p2572
    $region46: #{tpu_custom_call.1} parent=5 // pred_check_branch
      %2575 = sbr.rel (%p2573) target = $region48
    $region47: #{tpu_custom_call.1} parent=5 // pred_region
      %s2576 = ssub.s32 %s12, 2
      // Predicated region
      $region49: #{tpu_custom_call.1} parent=47 // pred_check
        %p2577 = pneg %p119
      $region50: #{tpu_custom_call.1} parent=47 // pred_check_branch
        %2579 = sbr.rel (%p2577) target = $region52
      $region51: #{tpu_custom_call.1} parent=47 // pred_region
        %s2580 = smul.u32 72, %s18
        %p2581 = scmp.lt.s32.totalorder %s2580, 287
        %s2582 = scalar_select %p2581, %s2580, 287
        %s2583 = smul.addr %s2582, 8
        %s2584 = scalar_lea.vmem %s3, %s2583
      $region52: #{tpu_custom_call.1} parent=47 // pred_fallthru
        _
      // Predicated region
      $region53: #{tpu_custom_call.1} parent=47 // pred_check
        %p2585 = pneg %p145
      $region54: #{tpu_custom_call.1} parent=47 // pred_check_branch
        %2587 = sbr.rel (%p2585) target = $region56
      $region55: #{tpu_custom_call.1} parent=47 // pred_region
        %s2588 = smul.u32 72, %s18
        %p2589 = scmp.lt.s32.totalorder %s2588, 287
        %s2590 = scalar_select %p2589, %s2588, 287
        %s2591 = smul.addr %s2590, 8
        %s2592 = scalar_lea.vmem %s4, %s2591
      $region56: #{tpu_custom_call.1} parent=47 // pred_fallthru
        _
      // Predicated region
      $region57: #{tpu_custom_call.1} parent=47 // pred_check
        %p2593 = pneg %p171
      $region58: #{tpu_custom_call.1} parent=47 // pred_check_branch
        %2595 = sbr.rel (%p2593) target = $region60
      $region59: #{tpu_custom_call.1} parent=47 // pred_region
        %s2596 = smul.u32 72, %s18
        %p2597 = scmp.lt.s32.totalorder %s2596, 287
        %s2598 = scalar_select %p2597, %s2596, 287
        %s2599 = smul.addr %s2598, 8
        %s2600 = scalar_lea.vmem %s5, %s2599
      $region60: #{tpu_custom_call.1} parent=47 // pred_fallthru
        _
    $region48: #{tpu_custom_call.1} parent=5 // pred_fallthru
      _
  $region6: #{tpu_custom_call.1} parent=0 // loop_footer
    %s16 = sadd.s32 1, %s12
  $region7: #{tpu_custom_call.1} parent=0 // loop_footer_branch
    %11 = sbr.rel target = $region3
  $region8: #{tpu_custom_call.1} parent=0 // loop_exit
    _

</llo_original>
